<compile_context>
chip_gen: v7x
topology: tpu7x:2x2x1
jax: 0.10.0
libtpu: 0.0.40
codegen_flags: <defaults>
</compile_context>

<pallas_src>
import functools

import jax
import jax.numpy as jnp
from jax.experimental import pallas as pl
from jax.experimental.pallas import tpu as pltpu


_BN_EPS = 1e-5


# ----------------------------- Pallas kernel --------------------------------

def _conv_bn_relu_kernel(x_ref, w_ref, scale_ref, bias_ref, o_ref, xpad_ref, *,
                         taps, padding, compute_dtype):
    """Fused Conv1d(stride=1) + folded BatchNorm(eval) + ReLU on one batch tile.

    x_ref:     (TB, Cin, L)        input dtype, raw NCL (un-padded, un-cast)
    w_ref:     (K, Cout, Cin)      compute dtype, tap-major
    scale_ref: (Cout, 1)           f32 folded BN scale
    bias_ref:  (Cout, 1)           f32 folded BN bias (includes conv bias)
    o_ref:     (TB, Cout, L_out)   output dtype, NCL
    xpad_ref:  (Cin, L + 2*pad)    VMEM scratch, compute dtype (padded slab)
    """
    tb, cout, l_out = o_ref.shape
    cin = x_ref.shape[1]
    length = x_ref.shape[2]

    w = w_ref[...]            # (K, Cout, Cin), loaded once per grid step
    scale = scale_ref[...]    # (Cout, 1) f32
    bias = bias_ref[...]      # (Cout, 1) f32

    if padding:
        # Zero the halo columns once; the interior is overwritten per slab.
        xpad_ref[:, :padding] = jnp.zeros((cin, padding), compute_dtype)
        xpad_ref[:, padding + length:] = jnp.zeros((cin, padding), compute_dtype)

    for b in range(tb):       # static unroll; tb is capped small by the wrapper
        # Stage one NCL slab into the padded VMEM scratch; single bf16 cast.
        xpad_ref[:, padding:padding + length] = x_ref[b].astype(compute_dtype)

        # Per-tap MXU dots chained into ONE f32 accumulator (no im2col copy).
        # (Cout, Cin) @ (Cin, L_out): contraction on LHS lanes / RHS sublanes,
        # i.e. the MXU-native orientation, and the result is already NCL.
        acc = jnp.dot(w[0], xpad_ref[:, 0:l_out],
                      preferred_element_type=jnp.float32)
        for k in range(1, taps):
            acc = acc + jnp.dot(w[k], xpad_ref[:, k:k + l_out],
                                preferred_element_type=jnp.float32)

        # Folded BatchNorm (eval) + ReLU in f32; exactly one cast at the store.
        y = jnp.maximum(acc * scale + bias, 0.0)
        o_ref[b] = y.astype(o_ref.dtype)


# ------------------------------ Tiling helpers -------------------------------

def _vmem_budget_bytes():
    """Generation-aware VMEM budget (v5e/v6e: 128 MiB, v7x: 64 MiB physical)."""
    cap = None
    try:
        cap = getattr(pltpu.get_tpu_info(), "vmem_capacity_bytes", None)
    except Exception:
        cap = None
    if not cap:
        cap = 64 * 1024 * 1024                      # conservative: v7x physical
    budget = min(int(cap * 0.60), 96 * 1024 * 1024)  # tile sizing target
    limit = min(int(cap * 0.75), 112 * 1024 * 1024)  # scoped VMEM limit we request
    return budget, limit


def _pick_batch_tile(batch, per_elem_vmem, fixed_vmem, per_elem_hbm, vmem_budget,
                     min_steps=4, min_step_bytes=1 << 20, max_tile=16):
    """Batch tile: fits VMEM, keeps >=min_steps grid steps (v7x: 2 TCs need >=2
    pipelined steps each), then prefers the smallest tile moving >=1 MiB/step."""
    max_tile = max(1, min(max_tile, batch))

    def fits(tb):
        return fixed_vmem + 2 * per_elem_vmem * tb <= vmem_budget  # 2x = dbl buf

    cands = [tb for tb in range(1, max_tile + 1) if fits(tb)] or [1]
    steps_ok = [tb for tb in cands if pl.cdiv(batch, tb) >= min(min_steps, batch)]
    cands = steps_ok or cands
    big = [tb for tb in cands if tb * per_elem_hbm >= min_step_bytes]
    return min(big) if big else max(cands)


# ------------------------------ Wrapper --------------------------------------

@functools.partial(
    jax.jit,
    static_argnames=("padding", "eps", "out_dtype", "compute_dtype"))
def conv_layer_forward(x_ncl, w_pt, conv_bias, gamma, beta, running_mean,
                       running_var, *, padding, eps=_BN_EPS,
                       out_dtype=jnp.bfloat16, compute_dtype=jnp.bfloat16):
    """ConvLayer.forward: Conv1d(filter, padding) + BatchNorm1d(eval) + ReLU.

    x_ncl: (B, Cin, L) PyTorch NCL.  w_pt: (Cout, Cin, K).  Others: (Cout,).
    Returns (B, Cout, L_out), L_out = L + 2*padding - K + 1, dtype `out_dtype`.
    NOTE: activations/weights are computed in bf16 with f32 MXU accumulation.
    """
    batch, cin, length = x_ncl.shape
    cout, cin_w, taps = w_pt.shape
    assert cin_w == cin
    l_out = length + 2 * padding - taps + 1

    # Fold BN (eval running stats) + conv bias into per-channel scale / bias.
    scale = (gamma / jnp.sqrt(running_var + eps)).astype(jnp.float32)
    bias = (beta + scale * (conv_bias - running_mean)).astype(jnp.float32)

    # Tiny weight reshuffle only: (Cout, Cin, K) -> (K, Cout, Cin).
    w_r = jnp.transpose(w_pt, (2, 0, 1)).astype(compute_dtype)

    # Tile sizing (generation-aware budget, >=4 steps, >=1 MiB/step when possible).
    x_bytes = jnp.dtype(x_ncl.dtype).itemsize
    c_bytes = jnp.dtype(compute_dtype).itemsize
    o_bytes = jnp.dtype(out_dtype).itemsize
    per_elem_vmem = cin * length * x_bytes + cout * l_out * o_bytes
    fixed_vmem = (2 * taps * cout * cin * c_bytes            # weight (2 bufs)
                  + 4 * cout * 128 * 4                       # scale/bias (padded)
                  + cin * (length + 2 * padding) * c_bytes   # padded slab scratch
                  + 2 * cout * l_out * 4)                    # f32 acc + epilogue
    budget, vmem_limit = _vmem_budget_bytes()
    tb = _pick_batch_tile(batch, per_elem_vmem, fixed_vmem, per_elem_vmem, budget)

    # Awkward batch sizes: pad to a multiple of the tile instead of tb=1 collapse.
    grid_b = pl.cdiv(batch, tb)
    padded_b = grid_b * tb
    x_in = x_ncl if padded_b == batch else jnp.pad(
        x_ncl, ((0, padded_b - batch), (0, 0), (0, 0)))

    kernel = functools.partial(_conv_bn_relu_kernel, taps=taps, padding=padding,
                               compute_dtype=compute_dtype)

    # Cout is kept as one full block (no N tiling); when Cout tiling is added it
    # should stay a multiple of 256 for v6e/v7x MXUs.
    out = pl.pallas_call(
        kernel,
        out_shape=jax.ShapeDtypeStruct((padded_b, cout, l_out), out_dtype),
        grid=(grid_b,),
        in_specs=[
            pl.BlockSpec((tb, cin, length), lambda i: (i, 0, 0)),
            pl.BlockSpec((taps, cout, cin), lambda i: (0, 0, 0)),
            pl.BlockSpec((cout, 1), lambda i: (0, 0)),
            pl.BlockSpec((cout, 1), lambda i: (0, 0)),
        ],
        out_specs=pl.BlockSpec((tb, cout, l_out), lambda i: (i, 0, 0)),
        scratch_shapes=[pltpu.VMEM((cin, length + 2 * padding), compute_dtype)],
        compiler_params=pltpu.CompilerParams(
            dimension_semantics=("parallel",),
            vmem_limit_bytes=vmem_limit),
    )(x_in, w_r, scale.reshape(cout, 1), bias.reshape(cout, 1))

    if padded_b != batch:
        out = out[:batch]
    return out


# ------------------------------ Reference ------------------------------------

def conv_layer_reference(x_ncl, w_pt, conv_bias, gamma, beta, running_mean,
                         running_var, padding, eps=_BN_EPS):
    """Pure-JAX reference of Conv1d + BatchNorm1d(eval) + ReLU (NCL layout)."""
    batch, cin, length = x_ncl.shape
    cout, _, taps = w_pt.shape
    l_out = length + 2 * padding - taps + 1
    x_pad = jnp.pad(x_ncl.astype(jnp.float32),
                    ((0, 0), (0, 0), (padding, padding)))
    y = jnp.zeros((batch, cout, l_out), jnp.float32) + conv_bias[None, :, None]
    for k in range(taps):
        y = y + jnp.einsum("oc,bcl->bol",
                           w_pt[:, :, k].astype(jnp.float32),
                           x_pad[:, :, k:k + l_out],
                           precision=jax.lax.Precision.HIGHEST)
    y = (y - running_mean[None, :, None]) * (
        gamma[None, :, None] / jnp.sqrt(running_var[None, :, None] + eps)
    ) + beta[None, :, None]
    return jnp.maximum(y, 0.0)


# ------------------------------ Main ------------------------------------------

if __name__ == "__main__":
    configs = [
        # (batch, cin, cout, length, filter_size, padding, out_dtype)
        (8, 128, 128, 256, 3, 1, jnp.bfloat16),   # lane-aligned, bf16 output
        (2, 64, 128, 64, 5, 2, jnp.float32),      # small Cin, f32 output
    ]
    key = jax.random.PRNGKey(0)
    for (batch, cin, cout, length, ksize, pad, odt) in configs:
        key, *ks = jax.random.split(key, 8)
        x = jax.random.normal(ks[0], (batch, cin, length), jnp.float32)
        w = jax.random.normal(ks[1], (cout, cin, ksize), jnp.float32) * 0.1
        b = jax.random.normal(ks[2], (cout,), jnp.float32) * 0.1
        gamma = 1.0 + 0.05 * jax.random.normal(ks[3], (cout,), jnp.float32)
        beta = 0.05 * jax.random.normal(ks[4], (cout,), jnp.float32)
        rmean = 0.1 * jax.random.normal(ks[5], (cout,), jnp.float32)
        rvar = jax.random.uniform(ks[6], (cout,), jnp.float32,
                                  minval=0.5, maxval=1.5)

        out = conv_layer_forward(x, w, b, gamma, beta, rmean, rvar,
                                 padding=pad, out_dtype=odt)
        out = jax.block_until_ready(out)

        l_out = length + 2 * pad - ksize + 1
        assert out.shape == (batch, cout, l_out), out.shape
        assert out.dtype == jnp.dtype(odt), out.dtype
        outf = out.astype(jnp.float32)
        assert bool(jnp.all(jnp.isfinite(outf)))
        assert bool(jnp.all(outf >= 0.0))  # ReLU range

        # Reference on bf16-quantized inputs (matches the kernel's compute
        # dtype); remaining difference is f32 accumulation order plus the
        # bf16 output quantization for the first config.
        xq = x.astype(jnp.bfloat16).astype(jnp.float32)
        wq = w.astype(jnp.bfloat16).astype(jnp.float32)
        ref = conv_layer_reference(xq, wq, b, gamma, beta, rmean, rvar, pad)
        tol = 5e-3 if odt == jnp.float32 else 6e-2
        err = float(jnp.max(jnp.abs(outf - ref)))
        assert err < tol, f"max abs err {err} (tol {tol})"

    print("KERNEL_OK")
</pallas_src>

<mosaic_0001>
module attributes {stable_mosaic.version = 11 : i64} {
  func.func @_conv_bn_relu_kernel(%arg0: i32, %arg1: memref<2x128x256xf32, #tpu.memory_space<vmem>>, %arg2: memref<3x128x128xbf16, #tpu.memory_space<vmem>>, %arg3: memref<128x1xf32, #tpu.memory_space<vmem>>, %arg4: memref<128x1xf32, #tpu.memory_space<vmem>>, %arg5: memref<2x128x256xbf16, #tpu.memory_space<vmem>>, %arg6: memref<128x258xbf16, #tpu.memory_space<vmem>>) attributes {dimension_semantics = [#tpu.dimension_semantics<parallel>], iteration_bounds = array<i64: 4>, scalar_prefetch = 0 : i64, scratch_operands = 1 : i64, tpu.core_type = #tpu.core_type<tc>, window_params = [{transform_indices = @transform_0, window_bounds = array<i64: 2, 128, 256>}, {pipeline_mode = #tpu.pipeline_mode<synchronous>, transform_indices = @transform_1, window_bounds = array<i64: 3, 128, 128>}, {pipeline_mode = #tpu.pipeline_mode<synchronous>, transform_indices = @transform_2, window_bounds = array<i64: 128, 1>}, {pipeline_mode = #tpu.pipeline_mode<synchronous>, transform_indices = @transform_3, window_bounds = array<i64: 128, 1>}, {transform_indices = @transform_4, window_bounds = array<i64: 2, 128, 256>}]} {
    %c0 = arith.constant 0 : index
    %c0_0 = arith.constant 0 : index
    %c0_1 = arith.constant 0 : index
    %0 = vector.load %arg2[%c0, %c0_0, %c0_1] : memref<3x128x128xbf16, #tpu.memory_space<vmem>>, vector<3x128x128xbf16>
    %c0_2 = arith.constant 0 : index
    %c0_3 = arith.constant 0 : index
    %1 = vector.load %arg3[%c0_2, %c0_3] : memref<128x1xf32, #tpu.memory_space<vmem>>, vector<128x1xf32>
    %c0_4 = arith.constant 0 : index
    %c0_5 = arith.constant 0 : index
    %2 = vector.load %arg4[%c0_4, %c0_5] : memref<128x1xf32, #tpu.memory_space<vmem>>, vector<128x1xf32>
    %cst = arith.constant 0.000000e+00 : bf16
    %3 = vector.broadcast %cst : bf16 to vector<128x1xbf16>
    %c0_6 = arith.constant 0 : index
    %c0_7 = arith.constant 0 : index
    %4 = vector.load %arg6[%c0_6, %c0_7] : memref<128x258xbf16, #tpu.memory_space<vmem>>, vector<128x1xbf16>
    tpu.vector_store %arg6[%c0_6, %c0_7], %3 {strides = array<i32>} : memref<128x258xbf16, #tpu.memory_space<vmem>>, vector<128x1xbf16>,
    %cst_8 = arith.constant 0.000000e+00 : bf16
    %5 = vector.broadcast %cst_8 : bf16 to vector<128x1xbf16>
    %c0_9 = arith.constant 0 : index
    %c257 = arith.constant 257 : index
    %6 = vector.load %arg6[%c0_9, %c257] : memref<128x258xbf16, #tpu.memory_space<vmem>>, vector<128x1xbf16>
    tpu.vector_store %arg6[%c0_9, %c257], %5 {strides = array<i32>} : memref<128x258xbf16, #tpu.memory_space<vmem>>, vector<128x1xbf16>,
    %c0_10 = arith.constant 0 : index
    %c0_11 = arith.constant 0 : index
    %c0_12 = arith.constant 0 : index
    %7 = vector.load %arg1[%c0_10, %c0_11, %c0_12] : memref<2x128x256xf32, #tpu.memory_space<vmem>>, vector<1x128x256xf32>
    %8 = vector.shape_cast %7 : vector<1x128x256xf32> to vector<128x256xf32>
    %9 = arith.truncf %8 : vector<128x256xf32> to vector<128x256xbf16>
    %c0_13 = arith.constant 0 : index
    %c1 = arith.constant 1 : index
    %10 = vector.load %arg6[%c0_13, %c1] : memref<128x258xbf16, #tpu.memory_space<vmem>>, vector<128x256xbf16>
    tpu.vector_store %arg6[%c0_13, %c1], %9 {strides = array<i32>} : memref<128x258xbf16, #tpu.memory_space<vmem>>, vector<128x256xbf16>,
    %11 = vector.extract_strided_slice %0 {offsets = [0, 0, 0], sizes = [1, 128, 128], strides = [1, 1, 1]} : vector<3x128x128xbf16> to vector<1x128x128xbf16>
    %12 = vector.shape_cast %11 : vector<1x128x128xbf16> to vector<128x128xbf16>
    %c0_14 = arith.constant 0 : index
    %c0_15 = arith.constant 0 : index
    %13 = vector.load %arg6[%c0_14, %c0_15] : memref<128x258xbf16, #tpu.memory_space<vmem>>, vector<128x256xbf16>
    %cst_16 = arith.constant dense<0.000000e+00> : vector<128x256xf32>
    %14 = tpu.matmul %12, %13, %cst_16 {dimension_numbers = #tpu.dot_dimension_numbers<[1], [0], [0], [1], [0, 0, 1, 1], [], []>} : vector<128x128xbf16>, vector<128x256xbf16>, vector<128x256xf32> -> vector<128x256xf32>
    %15 = vector.extract_strided_slice %0 {offsets = [1, 0, 0], sizes = [1, 128, 128], strides = [1, 1, 1]} : vector<3x128x128xbf16> to vector<1x128x128xbf16>
    %16 = vector.shape_cast %15 : vector<1x128x128xbf16> to vector<128x128xbf16>
    %c0_17 = arith.constant 0 : index
    %c1_18 = arith.constant 1 : index
    %17 = vector.load %arg6[%c0_17, %c1_18] : memref<128x258xbf16, #tpu.memory_space<vmem>>, vector<128x256xbf16>
    %cst_19 = arith.constant dense<0.000000e+00> : vector<128x256xf32>
    %18 = tpu.matmul %16, %17, %cst_19 {dimension_numbers = #tpu.dot_dimension_numbers<[1], [0], [0], [1], [0, 0, 1, 1], [], []>} : vector<128x128xbf16>, vector<128x256xbf16>, vector<128x256xf32> -> vector<128x256xf32>
    %19 = arith.addf %14, %18 : vector<128x256xf32>
    %20 = vector.extract_strided_slice %0 {offsets = [2, 0, 0], sizes = [1, 128, 128], strides = [1, 1, 1]} : vector<3x128x128xbf16> to vector<1x128x128xbf16>
    %21 = vector.shape_cast %20 : vector<1x128x128xbf16> to vector<128x128xbf16>
    %c0_20 = arith.constant 0 : index
    %c2 = arith.constant 2 : index
    %22 = vector.load %arg6[%c0_20, %c2] : memref<128x258xbf16, #tpu.memory_space<vmem>>, vector<128x256xbf16>
    %cst_21 = arith.constant dense<0.000000e+00> : vector<128x256xf32>
    %23 = tpu.matmul %21, %22, %cst_21 {dimension_numbers = #tpu.dot_dimension_numbers<[1], [0], [0], [1], [0, 0, 1, 1], [], []>} : vector<128x128xbf16>, vector<128x256xbf16>, vector<128x256xf32> -> vector<128x256xf32>
    %24 = arith.addf %19, %23 : vector<128x256xf32>
    %25 = vector.broadcast %1 : vector<128x1xf32> to vector<128x256xf32>
    %26 = arith.mulf %24, %25 : vector<128x256xf32>
    %27 = vector.broadcast %2 : vector<128x1xf32> to vector<128x256xf32>
    %28 = arith.addf %26, %27 : vector<128x256xf32>
    %cst_22 = arith.constant 0.000000e+00 : f32
    %29 = vector.broadcast %cst_22 : f32 to vector<128x256xf32>
    %30 = arith.maximumf %28, %29 : vector<128x256xf32>
    %31 = arith.truncf %30 : vector<128x256xf32> to vector<128x256xbf16>
    %c0_23 = arith.constant 0 : index
    %c0_24 = arith.constant 0 : index
    %c0_25 = arith.constant 0 : index
    %32 = vector.load %arg5[%c0_23, %c0_24, %c0_25] : memref<2x128x256xbf16, #tpu.memory_space<vmem>>, vector<1x128x256xbf16>
    %33 = vector.shape_cast %32 : vector<1x128x256xbf16> to vector<128x256xbf16>
    %34 = vector.shape_cast %31 : vector<128x256xbf16> to vector<1x128x256xbf16>
    tpu.vector_store %arg5[%c0_23, %c0_24, %c0_25], %34 {strides = array<i32>} : memref<2x128x256xbf16, #tpu.memory_space<vmem>>, vector<1x128x256xbf16>,
    %c1_26 = arith.constant 1 : index
    %c0_27 = arith.constant 0 : index
    %c0_28 = arith.constant 0 : index
    %35 = vector.load %arg1[%c1_26, %c0_27, %c0_28] : memref<2x128x256xf32, #tpu.memory_space<vmem>>, vector<1x128x256xf32>
    %36 = vector.shape_cast %35 : vector<1x128x256xf32> to vector<128x256xf32>
    %37 = arith.truncf %36 : vector<128x256xf32> to vector<128x256xbf16>
    %c0_29 = arith.constant 0 : index
    %c1_30 = arith.constant 1 : index
    %38 = vector.load %arg6[%c0_29, %c1_30] : memref<128x258xbf16, #tpu.memory_space<vmem>>, vector<128x256xbf16>
    tpu.vector_store %arg6[%c0_29, %c1_30], %37 {strides = array<i32>} : memref<128x258xbf16, #tpu.memory_space<vmem>>, vector<128x256xbf16>,
    %39 = vector.extract_strided_slice %0 {offsets = [0, 0, 0], sizes = [1, 128, 128], strides = [1, 1, 1]} : vector<3x128x128xbf16> to vector<1x128x128xbf16>
    %40 = vector.shape_cast %39 : vector<1x128x128xbf16> to vector<128x128xbf16>
    %c0_31 = arith.constant 0 : index
    %c0_32 = arith.constant 0 : index
    %41 = vector.load %arg6[%c0_31, %c0_32] : memref<128x258xbf16, #tpu.memory_space<vmem>>, vector<128x256xbf16>
    %cst_33 = arith.constant dense<0.000000e+00> : vector<128x256xf32>
    %42 = tpu.matmul %40, %41, %cst_33 {dimension_numbers = #tpu.dot_dimension_numbers<[1], [0], [0], [1], [0, 0, 1, 1], [], []>} : vector<128x128xbf16>, vector<128x256xbf16>, vector<128x256xf32> -> vector<128x256xf32>
    %43 = vector.extract_strided_slice %0 {offsets = [1, 0, 0], sizes = [1, 128, 128], strides = [1, 1, 1]} : vector<3x128x128xbf16> to vector<1x128x128xbf16>
    %44 = vector.shape_cast %43 : vector<1x128x128xbf16> to vector<128x128xbf16>
    %c0_34 = arith.constant 0 : index
    %c1_35 = arith.constant 1 : index
    %45 = vector.load %arg6[%c0_34, %c1_35] : memref<128x258xbf16, #tpu.memory_space<vmem>>, vector<128x256xbf16>
    %cst_36 = arith.constant dense<0.000000e+00> : vector<128x256xf32>
    %46 = tpu.matmul %44, %45, %cst_36 {dimension_numbers = #tpu.dot_dimension_numbers<[1], [0], [0], [1], [0, 0, 1, 1], [], []>} : vector<128x128xbf16>, vector<128x256xbf16>, vector<128x256xf32> -> vector<128x256xf32>
    %47 = arith.addf %42, %46 : vector<128x256xf32>
    %48 = vector.extract_strided_slice %0 {offsets = [2, 0, 0], sizes = [1, 128, 128], strides = [1, 1, 1]} : vector<3x128x128xbf16> to vector<1x128x128xbf16>
    %49 = vector.shape_cast %48 : vector<1x128x128xbf16> to vector<128x128xbf16>
    %c0_37 = arith.constant 0 : index
    %c2_38 = arith.constant 2 : index
    %50 = vector.load %arg6[%c0_37, %c2_38] : memref<128x258xbf16, #tpu.memory_space<vmem>>, vector<128x256xbf16>
    %cst_39 = arith.constant dense<0.000000e+00> : vector<128x256xf32>
    %51 = tpu.matmul %49, %50, %cst_39 {dimension_numbers = #tpu.dot_dimension_numbers<[1], [0], [0], [1], [0, 0, 1, 1], [], []>} : vector<128x128xbf16>, vector<128x256xbf16>, vector<128x256xf32> -> vector<128x256xf32>
    %52 = arith.addf %47, %51 : vector<128x256xf32>
    %53 = vector.broadcast %1 : vector<128x1xf32> to vector<128x256xf32>
    %54 = arith.mulf %52, %53 : vector<128x256xf32>
    %55 = vector.broadcast %2 : vector<128x1xf32> to vector<128x256xf32>
    %56 = arith.addf %54, %55 : vector<128x256xf32>
    %cst_40 = arith.constant 0.000000e+00 : f32
    %57 = vector.broadcast %cst_40 : f32 to vector<128x256xf32>
    %58 = arith.maximumf %56, %57 : vector<128x256xf32>
    %59 = arith.truncf %58 : vector<128x256xf32> to vector<128x256xbf16>
    %c1_41 = arith.constant 1 : index
    %c0_42 = arith.constant 0 : index
    %c0_43 = arith.constant 0 : index
    %60 = vector.load %arg5[%c1_41, %c0_42, %c0_43] : memref<2x128x256xbf16, #tpu.memory_space<vmem>>, vector<1x128x256xbf16>
    %61 = vector.shape_cast %60 : vector<1x128x256xbf16> to vector<128x256xbf16>
    %62 = vector.shape_cast %59 : vector<128x256xbf16> to vector<1x128x256xbf16>
    tpu.vector_store %arg5[%c1_41, %c0_42, %c0_43], %62 {strides = array<i32>} : memref<2x128x256xbf16, #tpu.memory_space<vmem>>, vector<1x128x256xbf16>,
    return
  }
  func.func @transform_0(%arg0: i32) -> (i32, i32, i32) {
    %c0_i32 = arith.constant 0 : i32
    %c0_i32_0 = arith.constant 0 : i32
    %c0_i32_1 = arith.constant 0 : i32
    return %arg0, %c0_i32, %c0_i32_0 : i32, i32, i32
  }
  func.func @transform_1(%arg0: i32) -> (i32, i32, i32) {
    %c0_i32 = arith.constant 0 : i32
    %c0_i32_0 = arith.constant 0 : i32
    %c0_i32_1 = arith.constant 0 : i32
    %c0_i32_2 = arith.constant 0 : i32
    return %c0_i32, %c0_i32_0, %c0_i32_1 : i32, i32, i32
  }
  func.func @transform_2(%arg0: i32) -> (i32, i32) {
    %c0_i32 = arith.constant 0 : i32
    %c0_i32_0 = arith.constant 0 : i32
    %c0_i32_1 = arith.constant 0 : i32
    return %c0_i32, %c0_i32_0 : i32, i32
  }
  func.func @transform_3(%arg0: i32) -> (i32, i32) {
    %c0_i32 = arith.constant 0 : i32
    %c0_i32_0 = arith.constant 0 : i32
    %c0_i32_1 = arith.constant 0 : i32
    return %c0_i32, %c0_i32_0 : i32, i32
  }
  func.func @transform_4(%arg0: i32) -> (i32, i32, i32) {
    %c0_i32 = arith.constant 0 : i32
    %c0_i32_0 = arith.constant 0 : i32
    %c0_i32_1 = arith.constant 0 : i32
    return %arg0, %c0_i32, %c0_i32_0 : i32, i32, i32
  }
}

</mosaic_0001>

<llo_original>
// kernel: conv_layer_forward.1
$region0: #{conv_layer_forward.1}
  #allocation0 [shape = 'u32[]', space=smem, size = 0x4, offset = 0x4, fixed_abs, tag = 'smem constant byte address 0x4 - core index']
  #allocation1 [shape = 'u32[144,128]{1,0:T(1,128)}', space=vmem, size = 0x12000, scoped, tag = 'internal scratch']
  #allocation2 [shape = 'bf16[128,258]{1,0:T(16,128)(2,1)}', space=vmem, size = 0x18000, scoped, tag = 'scratch operand']
  %s0 = inlined_call_operand.hbm [shape: f32[8,128,256], index: 0, kind: input, shape index: {}]
  %s1 = inlined_call_operand.vmem [shape: bf16[3,128,128], index: 1, kind: input, shape index: {}]
  %s2 = inlined_call_operand.vmem [shape: f32[128,1], index: 2, kind: input, shape index: {}]
  %s3 = inlined_call_operand.vmem [shape: f32[128,1], index: 3, kind: input, shape index: {}]
  %s4 = inlined_call_operand.hbm [shape: bf16[8,128,256], index: 4, kind: output, shape index: {}]
  %s5 = sld [smem:[#allocation0]]
  $region53: #{conv_layer_forward.1} parent=0
    _
  %s7 = ssub.s32 1, %s5
  %s8 = scalar_select 0, %s7, %s5
  $region1: #{conv_layer_forward.1} parent=0
    #allocation3 [shape = 'u8[524288]{0}', space=vmem, size = 0x80000, scoped, tag = 'input window, operand 0']
    #allocation4 [shape = 's32[2]{0}', space=sflag, size = 0x8, scoped, tag = 'scoped memory for conv_layer_forward.1']
    #allocation5 [shape = 's32[2]{0}', space=sflag, size = 0x8, scoped, tag = 'scoped memory for conv_layer_forward.1']
    #allocation6 [shape = 'u8[262144]{0}', space=vmem, size = 0x40000, scoped, tag = 'output window, operand 0']
    %9 = vsyncpa [#allocation4], 0
    %s10 = scalar_lea.sflag [#allocation4], 1
    %11 = vsyncpa %s10, 0
    %12 = vsyncpa [#allocation5], 0
    %s13 = scalar_lea.sflag [#allocation5], 1
    %14 = vsyncpa %s13, 0
    loop: start=0, step=1, limit=6
    $region2: #{conv_layer_forward.1} parent=1 // loop_pre_header
      _
    $region3: #{conv_layer_forward.1} parent=1 // loop_header
      %s16 = sphi 0, %s20
      %p17 = scmp.ge.s32.totalorder %s16, 6
      %s26 = sphi 0, %s28
      %s29 = sphi 0, %s26
      %s30 = sphi 0, %s29
      %s46 = sphi 0, %s30
      %s50 = sphi 0, %s50
      %s52 = sphi 0, %s50
      %s53 = sphi 0, %s52
      %s67 = sphi 0, %s53
      %s71 = sphi 0, %s71
      %s73 = sphi 0, %s71
      %s74 = sphi 0, %s73
      %s88 = sphi 0, %s74
      %s92 = sphi 0, %s92
      %s94 = sphi 0, %s92
      %s95 = sphi 0, %s94
      %s109 = sphi 0, %s95
      %s115 = sphi 0, %s117
      %s118 = sphi 0, %s115
      %s119 = sphi 0, %s118
      %s135 = sphi 0, %s119
    $region4: #{conv_layer_forward.1} parent=1 // loop_header_branch
      %19 = sbr.rel (%p17) target = $region8
    $region5: #{conv_layer_forward.1} parent=1 // loop_body
      %s21 = ssub.s32 %s16, 1
      %s22 = ssub.s32 %s16, 2
      %s23 = sadd.s32 %s16, 1
      %s24 = ssub.s32 %s16, %s23
      %p25 = scmp.eq.s32.totalorder %s24, 0
      %s27 = sadd.s32 %s26, 1
      %s28 = scalar_select %p25, %s26, %s27
      %p31 = pneg %p25
      %p32 = scmp.eq.s32.totalorder %s16, 3
      %p33 = por %p31, %p32
      %p34 = scmp.ne.s32.totalorder %s26, %s29
      %p35 = scmp.eq.s32.totalorder %s16, 0
      %p36 = por %p34, %p35
      %p37 = scmp.ne.s32.totalorder %s26, %s29
      %p38 = scmp.eq.s32.totalorder %s21, 3
      %p39 = por %p37, %p38
      %p40 = scmp.ne.s32.totalorder %s29, %s30
      %p41 = scmp.eq.s32.totalorder %s21, 0
      %p42 = por %p40, %p41
      %p43 = scmp.ne.s32.totalorder %s29, %s30
      %p44 = scmp.eq.s32.totalorder %s22, 3
      %p45 = por %p43, %p44
      %p47 = scmp.ne.s32.totalorder %s30, %s46
      %p48 = scmp.eq.s32.totalorder %s22, 0
      %p49 = por %p47, %p48
      %s51 = sadd.s32 %s50, 1
      %p54 = scmp.eq.s32.totalorder %s16, 3
      %p55 = scmp.ne.s32.totalorder %s50, %s52
      %p56 = scmp.eq.s32.totalorder %s16, 0
      %p57 = por %p55, %p56
      %p58 = scmp.ne.s32.totalorder %s50, %s52
      %p59 = scmp.eq.s32.totalorder %s21, 3
      %p60 = por %p58, %p59
      %p61 = scmp.ne.s32.totalorder %s52, %s53
      %p62 = scmp.eq.s32.totalorder %s21, 0
      %p63 = por %p61, %p62
      %p64 = scmp.ne.s32.totalorder %s52, %s53
      %p65 = scmp.eq.s32.totalorder %s22, 3
      %p66 = por %p64, %p65
      %p68 = scmp.ne.s32.totalorder %s53, %s67
      %p69 = scmp.eq.s32.totalorder %s22, 0
      %p70 = por %p68, %p69
      %s72 = sadd.s32 %s71, 1
      %p75 = scmp.eq.s32.totalorder %s16, 3
      %p76 = scmp.ne.s32.totalorder %s71, %s73
      %p77 = scmp.eq.s32.totalorder %s16, 0
      %p78 = por %p76, %p77
      %p79 = scmp.ne.s32.totalorder %s71, %s73
      %p80 = scmp.eq.s32.totalorder %s21, 3
      %p81 = por %p79, %p80
      %p82 = scmp.ne.s32.totalorder %s73, %s74
      %p83 = scmp.eq.s32.totalorder %s21, 0
      %p84 = por %p82, %p83
      %p85 = scmp.ne.s32.totalorder %s73, %s74
      %p86 = scmp.eq.s32.totalorder %s22, 3
      %p87 = por %p85, %p86
      %p89 = scmp.ne.s32.totalorder %s74, %s88
      %p90 = scmp.eq.s32.totalorder %s22, 0
      %p91 = por %p89, %p90
      %s93 = sadd.s32 %s92, 1
      %p96 = scmp.eq.s32.totalorder %s16, 3
      %p97 = scmp.ne.s32.totalorder %s92, %s94
      %p98 = scmp.eq.s32.totalorder %s16, 0
      %p99 = por %p97, %p98
      %p100 = scmp.ne.s32.totalorder %s92, %s94
      %p101 = scmp.eq.s32.totalorder %s21, 3
      %p102 = por %p100, %p101
      %p103 = scmp.ne.s32.totalorder %s94, %s95
      %p104 = scmp.eq.s32.totalorder %s21, 0
      %p105 = por %p103, %p104
      %p106 = scmp.ne.s32.totalorder %s94, %s95
      %p107 = scmp.eq.s32.totalorder %s22, 3
      %p108 = por %p106, %p107
      %p110 = scmp.ne.s32.totalorder %s95, %s109
      %p111 = scmp.eq.s32.totalorder %s22, 0
      %p112 = por %p110, %p111
      %s113 = ssub.s32 %s16, %s23
      %p114 = scmp.eq.s32.totalorder %s113, 0
      %s116 = sadd.s32 %s115, 1
      %s117 = scalar_select %p114, %s115, %s116
      %p120 = pneg %p114
      %p121 = scmp.eq.s32.totalorder %s16, 3
      %p122 = por %p120, %p121
      %p123 = scmp.ne.s32.totalorder %s115, %s118
      %p124 = scmp.eq.s32.totalorder %s16, 0
      %p125 = por %p123, %p124
      %p126 = scmp.ne.s32.totalorder %s115, %s118
      %p127 = scmp.eq.s32.totalorder %s21, 3
      %p128 = por %p126, %p127
      %p129 = scmp.ne.s32.totalorder %s118, %s119
      %p130 = scmp.eq.s32.totalorder %s21, 0
      %p131 = por %p129, %p130
      %p132 = scmp.ne.s32.totalorder %s118, %s119
      %p133 = scmp.eq.s32.totalorder %s22, 3
      %p134 = por %p132, %p133
      %p136 = scmp.ne.s32.totalorder %s119, %s135
      %p137 = scmp.eq.s32.totalorder %s22, 0
      %p138 = por %p136, %p137
      %p139 = scmp.le.s32.totalorder 1, %s16
      %p140 = scmp.lt.s32.totalorder %s16, 5
      %p141 = pnand %p139, %p140
      %p142 = pneg %p141
      // Predicated region
      $region9: #{conv_layer_forward.1} parent=5 // pred_check
        _
      $region10: #{conv_layer_forward.1} parent=5 // pred_check_branch
        %144 = sbr.rel (%p141) target = $region12
      $region11: #{conv_layer_forward.1} parent=5 // pred_region
        %s145 = ssub.s32 %s16, 1
        // Predicated region
        $region13: #{conv_layer_forward.1} parent=11 // pred_check
          %p146 = pneg %p63
        $region14: #{conv_layer_forward.1} parent=11 // pred_check_branch
          %148 = sbr.rel (%p146) target = $region16
        $region15: #{conv_layer_forward.1} parent=11 // pred_region
          _
        $region16: #{conv_layer_forward.1} parent=11 // pred_fallthru
          _
        // Predicated region
        $region17: #{conv_layer_forward.1} parent=11 // pred_check
          %p149 = pneg %p84
        $region18: #{conv_layer_forward.1} parent=11 // pred_check_branch
          %151 = sbr.rel (%p149) target = $region20
        $region19: #{conv_layer_forward.1} parent=11 // pred_region
          _
        $region20: #{conv_layer_forward.1} parent=11 // pred_fallthru
          _
        // Predicated region
        $region21: #{conv_layer_forward.1} parent=11 // pred_check
          %p152 = pneg %p105
        $region22: #{conv_layer_forward.1} parent=11 // pred_check_branch
          %154 = sbr.rel (%p152) target = $region24
        $region23: #{conv_layer_forward.1} parent=11 // pred_region
          _
        $region24: #{conv_layer_forward.1} parent=11 // pred_fallthru
          _
      $region12: #{conv_layer_forward.1} parent=5 // pred_fallthru
        _
      %p155 = scmp.lt.s32.totalorder %s16, 4
      // Predicated region
      $region25: #{conv_layer_forward.1} parent=5 // pred_check
        %p156 = pneg %p155
      $region26: #{conv_layer_forward.1} parent=5 // pred_check_branch
        %158 = sbr.rel (%p156) target = $region28
      $region27: #{conv_layer_forward.1} parent=5 // pred_region
        // Predicated region
        $region29: #{conv_layer_forward.1} parent=27 // pred_check
          %p159 = pneg %p36
        $region30: #{conv_layer_forward.1} parent=27 // pred_check_branch
          %161 = sbr.rel (%p159) target = $region32
        $region31: #{conv_layer_forward.1} parent=27 // pred_region
          %s162 = sand.u32 %s26, 1
          %s163 = scalar_lea.sflag [#allocation4], %s162
          %s164 = sand.u32 %s26, 1
          %s165 = smul.addr %s164, 512
          %s166 = scalar_lea.vmem [#allocation3], %s165
          %s167 = smul.u32 2, %s16
          %s169 = ssub.s32 8192, 8192
          %170 = vsyncadd %s163, %s169
          %s171 = smul.addr %s167, 32
          %s172 = smul.addr %s171, 128
          %s173 = scalar_lea.hbm %s0, %s172
          %s174 = sshll.u32 %s166, 4
          %s175 = int_to_ptr.vmem [resolvable:$true] %s174
          %180 = dma.hbm_to_vmem [thread:$0]  %s173, 8192, %s175, %s163, 256, 256, 16
        $region32: #{conv_layer_forward.1} parent=27 // pred_fallthru
          _
      $region28: #{conv_layer_forward.1} parent=5 // pred_fallthru
        _
      %p181 = scmp.le.s32.totalorder 1, %s16
      %p182 = scmp.lt.s32.totalorder %s16, 5
      %p183 = pnand %p181, %p182
      %p184 = pneg %p183
      // Predicated region
      $region33: #{conv_layer_forward.1} parent=5 // pred_check
        _
      $region34: #{conv_layer_forward.1} parent=5 // pred_check_branch
        %186 = sbr.rel (%p183) target = $region36
      $region35: #{conv_layer_forward.1} parent=5 // pred_region
        %s187 = ssub.s32 %s16, 1
        %s188 = sand.u32 %s29, 1
        %s189 = scalar_lea.sflag [#allocation4], %s188
        %s190 = sand.u32 %s29, 1
        %s191 = smul.addr %s190, 512
        %s192 = scalar_lea.vmem [#allocation3], %s191
        // Predicated region
        $region37: #{conv_layer_forward.1} parent=35 // pred_check
          %p193 = pneg %p42
        $region38: #{conv_layer_forward.1} parent=35 // pred_check_branch
          %195 = sbr.rel (%p193) target = $region40
        $region39: #{conv_layer_forward.1} parent=35 // pred_region
          %196 = dma.done %s189, 8192
        $region40: #{conv_layer_forward.1} parent=35 // pred_fallthru
          _
        %s197 = sand.u32 %s29, 1
        %s198 = scalar_lea.sflag [#allocation4], %s197
        %s199 = sand.u32 %s29, 1
        %s200 = smul.addr %s199, 512
        %s201 = scalar_lea.vmem [#allocation3], %s200
        %p202 = pneg %p42
        %p203 = pneg %p39
        %p204 = pneg %p63
        %p205 = pneg %p60
        %p206 = pneg %p84
        %p207 = pneg %p81
        %p208 = pneg %p105
        %p209 = pneg %p102
        %p210 = pneg %p131
        %p211 = pneg %p128
        %s212 = sand.u32 %s118, 1
        %s213 = scalar_lea.sflag [#allocation5], %s212
        %s214 = sand.u32 %s118, 1
        %s215 = smul.addr %s214, 256
        %s216 = scalar_lea.vmem [#allocation6], %s215
        %s217 = smul.u32 2, %s21
        %s218 = smul.u32 2, %s21
        %v220 = vld [vmem:[%s1] sm:$0xf]
        %v221 = vld [vmem:[%s1 + $0x4] sm:$0xf]
        %v222 = vld [vmem:[%s1 + $0x8] sm:$0xf]
        %v223 = vld [vmem:[%s1 + $0xc] sm:$0xf]
        %v224 = vld [vmem:[%s1 + $0x10] sm:$0xf]
        %v225 = vld [vmem:[%s1 + $0x14] sm:$0xf]
        %v226 = vld [vmem:[%s1 + $0x18] sm:$0xf]
        %v227 = vld [vmem:[%s1 + $0x1c] sm:$0xf]
        %v228 = vld [vmem:[%s1 + $0x20] sm:$0xf]
        %v229 = vld [vmem:[%s1 + $0x24] sm:$0xf]
        %v230 = vld [vmem:[%s1 + $0x28] sm:$0xf]
        %v231 = vld [vmem:[%s1 + $0x2c] sm:$0xf]
        %v232 = vld [vmem:[%s1 + $0x30] sm:$0xf]
        %v233 = vld [vmem:[%s1 + $0x34] sm:$0xf]
        %v234 = vld [vmem:[%s1 + $0x38] sm:$0xf]
        %v235 = vld [vmem:[%s1 + $0x3c] sm:$0xf]
        %v236 = vld [vmem:[%s1 + $0x40] sm:$0xf]
        %v237 = vld [vmem:[%s1 + $0x44] sm:$0xf]
        %v238 = vld [vmem:[%s1 + $0x48] sm:$0xf]
        %v239 = vld [vmem:[%s1 + $0x4c] sm:$0xf]
        %v240 = vld [vmem:[%s1 + $0x50] sm:$0xf]
        %v241 = vld [vmem:[%s1 + $0x54] sm:$0xf]
        %v242 = vld [vmem:[%s1 + $0x58] sm:$0xf]
        %v243 = vld [vmem:[%s1 + $0x5c] sm:$0xf]
        %v244 = vld [vmem:[%s1 + $0x60] sm:$0xf]
        %v245 = vld [vmem:[%s1 + $0x64] sm:$0xf]
        %v246 = vld [vmem:[%s1 + $0x68] sm:$0xf]
        %v247 = vld [vmem:[%s1 + $0x6c] sm:$0xf]
        %v248 = vld [vmem:[%s1 + $0x70] sm:$0xf]
        %v249 = vld [vmem:[%s1 + $0x74] sm:$0xf]
        %v250 = vld [vmem:[%s1 + $0x78] sm:$0xf]
        %v251 = vld [vmem:[%s1 + $0x7c] sm:$0xf]
        %v252 = vld [vmem:[%s1 + $0x80] sm:$0xf]
        %v253 = vld [vmem:[%s1 + $0x84] sm:$0xf]
        %v254 = vld [vmem:[%s1 + $0x88] sm:$0xf]
        %v255 = vld [vmem:[%s1 + $0x8c] sm:$0xf]
        %v256 = vld [vmem:[%s1 + $0x90] sm:$0xf]
        %v257 = vld [vmem:[%s1 + $0x94] sm:$0xf]
        %v258 = vld [vmem:[%s1 + $0x98] sm:$0xf]
        %v259 = vld [vmem:[%s1 + $0x9c] sm:$0xf]
        %v260 = vld [vmem:[%s1 + $0xa0] sm:$0xf]
        %v261 = vld [vmem:[%s1 + $0xa4] sm:$0xf]
        %v262 = vld [vmem:[%s1 + $0xa8] sm:$0xf]
        %v263 = vld [vmem:[%s1 + $0xac] sm:$0xf]
        %v264 = vld [vmem:[%s1 + $0xb0] sm:$0xf]
        %v265 = vld [vmem:[%s1 + $0xb4] sm:$0xf]
        %v266 = vld [vmem:[%s1 + $0xb8] sm:$0xf]
        %v267 = vld [vmem:[%s1 + $0xbc] sm:$0xf]
        %v268 = vld [vmem:[%s2] sm:$0xff]
        %v269 = vld [vmem:[%s2 + $0x8] sm:$0xff]
        %v270 = vld [vmem:[%s2 + $0x10] sm:$0xff]
        %v271 = vld [vmem:[%s2 + $0x18] sm:$0xff]
        %v272 = vld [vmem:[%s2 + $0x20] sm:$0xff]
        %v273 = vld [vmem:[%s2 + $0x28] sm:$0xff]
        %v274 = vld [vmem:[%s2 + $0x30] sm:$0xff]
        %v275 = vld [vmem:[%s2 + $0x38] sm:$0xff]
        %v276 = vld [vmem:[%s2 + $0x40] sm:$0xff]
        %v277 = vld [vmem:[%s2 + $0x48] sm:$0xff]
        %v278 = vld [vmem:[%s2 + $0x50] sm:$0xff]
        %v279 = vld [vmem:[%s2 + $0x58] sm:$0xff]
        %v280 = vld [vmem:[%s2 + $0x60] sm:$0xff]
        %v281 = vld [vmem:[%s2 + $0x68] sm:$0xff]
        %v282 = vld [vmem:[%s2 + $0x70] sm:$0xff]
        %v283 = vld [vmem:[%s2 + $0x78] sm:$0xff]
        %v284 = vld [vmem:[%s3] sm:$0xff]
        %v285 = vld [vmem:[%s3 + $0x8] sm:$0xff]
        %v286 = vld [vmem:[%s3 + $0x10] sm:$0xff]
        %v287 = vld [vmem:[%s3 + $0x18] sm:$0xff]
        %v288 = vld [vmem:[%s3 + $0x20] sm:$0xff]
        %v289 = vld [vmem:[%s3 + $0x28] sm:$0xff]
        %v290 = vld [vmem:[%s3 + $0x30] sm:$0xff]
        %v291 = vld [vmem:[%s3 + $0x38] sm:$0xff]
        %v292 = vld [vmem:[%s3 + $0x40] sm:$0xff]
        %v293 = vld [vmem:[%s3 + $0x48] sm:$0xff]
        %v294 = vld [vmem:[%s3 + $0x50] sm:$0xff]
        %v295 = vld [vmem:[%s3 + $0x58] sm:$0xff]
        %v296 = vld [vmem:[%s3 + $0x60] sm:$0xff]
        %v297 = vld [vmem:[%s3 + $0x68] sm:$0xff]
        %v298 = vld [vmem:[%s3 + $0x70] sm:$0xff]
        %v299 = vld [vmem:[%s3 + $0x78] sm:$0xff]
        %vm300 = vcmask 7168
        %301 = vst.msk [vmem:[#allocation2] sm:$0xff] %vm300, 0
        %302 = vst.msk [vmem:[#allocation2 + $0x18] sm:$0xff] %vm300, 0
        %303 = vst.msk [vmem:[#allocation2 + $0x30] sm:$0xff] %vm300, 0
        %304 = vst.msk [vmem:[#allocation2 + $0x48] sm:$0xff] %vm300, 0
        %305 = vst.msk [vmem:[#allocation2 + $0x60] sm:$0xff] %vm300, 0
        %306 = vst.msk [vmem:[#allocation2 + $0x78] sm:$0xff] %vm300, 0
        %307 = vst.msk [vmem:[#allocation2 + $0x90] sm:$0xff] %vm300, 0
        %308 = vst.msk [vmem:[#allocation2 + $0xa8] sm:$0xff] %vm300, 0
        %vm309 = vcmask 15368
        %310 = vst.msk [vmem:[#allocation2 + $0x10] sm:$0xff] %vm309, 0
        %311 = vst.msk [vmem:[#allocation2 + $0x28] sm:$0xff] %vm309, 0
        %312 = vst.msk [vmem:[#allocation2 + $0x40] sm:$0xff] %vm309, 0
        %313 = vst.msk [vmem:[#allocation2 + $0x58] sm:$0xff] %vm309, 0
        %314 = vst.msk [vmem:[#allocation2 + $0x70] sm:$0xff] %vm309, 0
        %315 = vst.msk [vmem:[#allocation2 + $0x88] sm:$0xff] %vm309, 0
        %316 = vst.msk [vmem:[#allocation2 + $0xa0] sm:$0xff] %vm309, 0
        %317 = vst.msk [vmem:[#allocation2 + $0xb8] sm:$0xff] %vm309, 0
        %v318 = vld [vmem:[%s192] sm:$0xff]
        %v319 = vld [vmem:[%s192 + $0x8] sm:$0xff]
        %v320 = vld [vmem:[%s192 + $0x10] sm:$0xff]
        %v321 = vld [vmem:[%s192 + $0x18] sm:$0xff]
        %v322 = vld [vmem:[%s192 + $0x20] sm:$0xff]
        %v323 = vld [vmem:[%s192 + $0x28] sm:$0xff]
        %v324 = vld [vmem:[%s192 + $0x30] sm:$0xff]
        %v325 = vld [vmem:[%s192 + $0x38] sm:$0xff]
        %v326 = vld [vmem:[%s192 + $0x40] sm:$0xff]
        %v327 = vld [vmem:[%s192 + $0x48] sm:$0xff]
        %v328 = vld [vmem:[%s192 + $0x50] sm:$0xff]
        %v329 = vld [vmem:[%s192 + $0x58] sm:$0xff]
        %v330 = vld [vmem:[%s192 + $0x60] sm:$0xff]
        %v331 = vld [vmem:[%s192 + $0x68] sm:$0xff]
        %v332 = vld [vmem:[%s192 + $0x70] sm:$0xff]
        %v333 = vld [vmem:[%s192 + $0x78] sm:$0xff]
        %v334 = vld [vmem:[%s192 + $0x80] sm:$0xff]
        %v335 = vld [vmem:[%s192 + $0x88] sm:$0xff]
        %v336 = vld [vmem:[%s192 + $0x90] sm:$0xff]
        %v337 = vld [vmem:[%s192 + $0x98] sm:$0xff]
        %v338 = vld [vmem:[%s192 + $0xa0] sm:$0xff]
        %v339 = vld [vmem:[%s192 + $0xa8] sm:$0xff]
        %v340 = vld [vmem:[%s192 + $0xb0] sm:$0xff]
        %v341 = vld [vmem:[%s192 + $0xb8] sm:$0xff]
        %v342 = vld [vmem:[%s192 + $0xc0] sm:$0xff]
        %v343 = vld [vmem:[%s192 + $0xc8] sm:$0xff]
        %v344 = vld [vmem:[%s192 + $0xd0] sm:$0xff]
        %v345 = vld [vmem:[%s192 + $0xd8] sm:$0xff]
        %v346 = vld [vmem:[%s192 + $0xe0] sm:$0xff]
        %v347 = vld [vmem:[%s192 + $0xe8] sm:$0xff]
        %v348 = vld [vmem:[%s192 + $0xf0] sm:$0xff]
        %v349 = vld [vmem:[%s192 + $0xf8] sm:$0xff]
        %v350 = vpack.c.bf16 %v320, %v318
        %v351 = vpack.c.bf16 %v321, %v319
        %v352 = vpack.c.bf16 %v324, %v322
        %v353 = vpack.c.bf16 %v325, %v323
        %v354 = vpack.c.bf16 %v328, %v326
        %v355 = vpack.c.bf16 %v329, %v327
        %v356 = vpack.c.bf16 %v332, %v330
        %v357 = vpack.c.bf16 %v333, %v331
        %v358 = vpack.c.bf16 %v336, %v334
        %v359 = vpack.c.bf16 %v337, %v335
        %v360 = vpack.c.bf16 %v340, %v338
        %v361 = vpack.c.bf16 %v341, %v339
        %v362 = vpack.c.bf16 %v344, %v342
        %v363 = vpack.c.bf16 %v345, %v343
        %v364 = vpack.c.bf16 %v348, %v346
        %v365 = vpack.c.bf16 %v349, %v347
        %382 = vrot.lane.b32.xlu0 %v350, 1
        %v383 = vpop.permute.xlu0 %382
        %384 = vrot.lane.b32.xlu0 %v351, 1
        %v385 = vpop.permute.xlu0 %384
        %386 = vrot.lane.b32.xlu0 %v352, 1
        %v387 = vpop.permute.xlu0 %386
        %388 = vrot.lane.b32.xlu0 %v353, 1
        %v389 = vpop.permute.xlu0 %388
        %390 = vrot.lane.b32.xlu0 %v354, 1
        %v391 = vpop.permute.xlu0 %390
        %392 = vrot.lane.b32.xlu0 %v355, 1
        %v393 = vpop.permute.xlu0 %392
        %394 = vrot.lane.b32.xlu0 %v356, 1
        %v395 = vpop.permute.xlu0 %394
        %396 = vrot.lane.b32.xlu0 %v357, 1
        %v397 = vpop.permute.xlu0 %396
        %398 = vrot.lane.b32.xlu0 %v358, 1
        %v399 = vpop.permute.xlu0 %398
        %400 = vrot.lane.b32.xlu0 %v359, 1
        %v401 = vpop.permute.xlu0 %400
        %402 = vrot.lane.b32.xlu0 %v360, 1
        %v403 = vpop.permute.xlu0 %402
        %404 = vrot.lane.b32.xlu0 %v361, 1
        %v405 = vpop.permute.xlu0 %404
        %406 = vrot.lane.b32.xlu0 %v362, 1
        %v407 = vpop.permute.xlu0 %406
        %408 = vrot.lane.b32.xlu0 %v363, 1
        %v409 = vpop.permute.xlu0 %408
        %410 = vrot.lane.b32.xlu0 %v364, 1
        %v411 = vpop.permute.xlu0 %410
        %412 = vrot.lane.b32.xlu0 %v365, 1
        %v413 = vpop.permute.xlu0 %412
        %vm414 = vcmask 7168
        %v415 = vsel %vm414, %v383, %v385
        %v416 = vsel %vm414, %v387, %v389
        %v417 = vsel %vm414, %v391, %v393
        %v418 = vsel %vm414, %v395, %v397
        %v419 = vsel %vm414, %v399, %v401
        %v420 = vsel %vm414, %v403, %v405
        %v421 = vsel %vm414, %v407, %v409
        %v422 = vsel %vm414, %v411, %v413
        %vm447 = vcmask 1047560
        %448 = vst.msk [vmem:[#allocation2] sm:$0xff] %vm447, %v383
        %449 = vst [vmem:[#allocation2 + $0x8] sm:$0xff] %v415
        %450 = vst.msk [vmem:[#allocation2 + $0x10] sm:$0xff] %vm300, %v385
        %451 = vst.msk [vmem:[#allocation2 + $0x18] sm:$0xff] %vm447, %v387
        %452 = vst [vmem:[#allocation2 + $0x20] sm:$0xff] %v416
        %453 = vst.msk [vmem:[#allocation2 + $0x28] sm:$0xff] %vm300, %v389
        %454 = vst.msk [vmem:[#allocation2 + $0x30] sm:$0xff] %vm447, %v391
        %455 = vst [vmem:[#allocation2 + $0x38] sm:$0xff] %v417
        %456 = vst.msk [vmem:[#allocation2 + $0x40] sm:$0xff] %vm300, %v393
        %457 = vst.msk [vmem:[#allocation2 + $0x48] sm:$0xff] %vm447, %v395
        %458 = vst [vmem:[#allocation2 + $0x50] sm:$0xff] %v418
        %459 = vst.msk [vmem:[#allocation2 + $0x58] sm:$0xff] %vm300, %v397
        %460 = vst.msk [vmem:[#allocation2 + $0x60] sm:$0xff] %vm447, %v399
        %461 = vst [vmem:[#allocation2 + $0x68] sm:$0xff] %v419
        %462 = vst.msk [vmem:[#allocation2 + $0x70] sm:$0xff] %vm300, %v401
        %463 = vst.msk [vmem:[#allocation2 + $0x78] sm:$0xff] %vm447, %v403
        %464 = vst [vmem:[#allocation2 + $0x80] sm:$0xff] %v420
        %465 = vst.msk [vmem:[#allocation2 + $0x88] sm:$0xff] %vm300, %v405
        %466 = vst.msk [vmem:[#allocation2 + $0x90] sm:$0xff] %vm447, %v407
        %467 = vst [vmem:[#allocation2 + $0x98] sm:$0xff] %v421
        %468 = vst.msk [vmem:[#allocation2 + $0xa0] sm:$0xff] %vm300, %v409
        %469 = vst.msk [vmem:[#allocation2 + $0xa8] sm:$0xff] %vm447, %v411
        %470 = vst [vmem:[#allocation2 + $0xb0] sm:$0xff] %v422
        %471 = vst.msk [vmem:[#allocation2 + $0xb8] sm:$0xff] %vm300, %v413
        %v472 = vld [vmem:[#allocation2] sm:$0xff]
        %v473 = vld [vmem:[#allocation2 + $0x8] sm:$0xff]
        %v474 = vld [vmem:[#allocation2 + $0x18] sm:$0xff]
        %v475 = vld [vmem:[#allocation2 + $0x20] sm:$0xff]
        %v476 = vld [vmem:[#allocation2 + $0x30] sm:$0xff]
        %v477 = vld [vmem:[#allocation2 + $0x38] sm:$0xff]
        %v478 = vld [vmem:[#allocation2 + $0x48] sm:$0xff]
        %v479 = vld [vmem:[#allocation2 + $0x50] sm:$0xff]
        %v480 = vld [vmem:[#allocation2 + $0x60] sm:$0xff]
        %v481 = vld [vmem:[#allocation2 + $0x68] sm:$0xff]
        %v482 = vld [vmem:[#allocation2 + $0x78] sm:$0xff]
        %v483 = vld [vmem:[#allocation2 + $0x80] sm:$0xff]
        %v484 = vld [vmem:[#allocation2 + $0x90] sm:$0xff]
        %v485 = vld [vmem:[#allocation2 + $0x98] sm:$0xff]
        %v486 = vld [vmem:[#allocation2 + $0xa8] sm:$0xff]
        %v487 = vld [vmem:[#allocation2 + $0xb0] sm:$0xff]
        %v488 = vld [vmem:[#allocation2 + $0x10] sm:$0xff]
        %v489 = vld [vmem:[#allocation2 + $0x28] sm:$0xff]
        %v490 = vld [vmem:[#allocation2 + $0x40] sm:$0xff]
        %v491 = vld [vmem:[#allocation2 + $0x58] sm:$0xff]
        %v492 = vld [vmem:[#allocation2 + $0x70] sm:$0xff]
        %v493 = vld [vmem:[#allocation2 + $0x88] sm:$0xff]
        %v494 = vld [vmem:[#allocation2 + $0xa0] sm:$0xff]
        %v495 = vld [vmem:[#allocation2 + $0xb8] sm:$0xff]
        %v512 = vunpack.c.l.b16 %v236
        %v513 = vunpack.c.l.b16 %v237
        %v514 = vunpack.c.l.b16 %v238
        %v515 = vunpack.c.l.b16 %v239
        %v516 = vunpack.c.l.b16 %v240
        %v517 = vunpack.c.l.b16 %v241
        %v518 = vunpack.c.l.b16 %v242
        %v519 = vunpack.c.l.b16 %v243
        %v520 = vunpack.c.l.b16 %v244
        %v521 = vunpack.c.l.b16 %v245
        %v522 = vunpack.c.l.b16 %v246
        %v523 = vunpack.c.l.b16 %v247
        %v524 = vunpack.c.l.b16 %v248
        %v525 = vunpack.c.l.b16 %v249
        %v526 = vunpack.c.l.b16 %v250
        %v527 = vunpack.c.l.b16 %v251
        %v528 = vpack.c.b16 %v513, %v512
        %v529 = vpack.c.b16 %v515, %v514
        %v530 = vpack.c.b16 %v517, %v516
        %v531 = vpack.c.b16 %v519, %v518
        %v532 = vpack.c.b16 %v521, %v520
        %v533 = vpack.c.b16 %v523, %v522
        %v534 = vpack.c.b16 %v525, %v524
        %v535 = vpack.c.b16 %v527, %v526
        %568 = vrot.lane.b32.xlu0 %v472, 127
        %v569 = vpop.permute.xlu0 %568
        %570 = vrot.lane.b32.xlu0 %v473, 127
        %v571 = vpop.permute.xlu0 %570
        %572 = vrot.lane.b32.xlu0 %v488, 127
        %v573 = vpop.permute.xlu0 %572
        %574 = vrot.lane.b32.xlu0 %v474, 127
        %v575 = vpop.permute.xlu0 %574
        %576 = vrot.lane.b32.xlu0 %v475, 127
        %v577 = vpop.permute.xlu0 %576
        %578 = vrot.lane.b32.xlu0 %v489, 127
        %v579 = vpop.permute.xlu0 %578
        %580 = vrot.lane.b32.xlu0 %v476, 127
        %v581 = vpop.permute.xlu0 %580
        %582 = vrot.lane.b32.xlu0 %v477, 127
        %v583 = vpop.permute.xlu0 %582
        %584 = vrot.lane.b32.xlu0 %v490, 127
        %v585 = vpop.permute.xlu0 %584
        %586 = vrot.lane.b32.xlu0 %v478, 127
        %v587 = vpop.permute.xlu0 %586
        %588 = vrot.lane.b32.xlu0 %v479, 127
        %v589 = vpop.permute.xlu0 %588
        %590 = vrot.lane.b32.xlu0 %v491, 127
        %v591 = vpop.permute.xlu0 %590
        %592 = vrot.lane.b32.xlu0 %v480, 127
        %v593 = vpop.permute.xlu0 %592
        %594 = vrot.lane.b32.xlu0 %v481, 127
        %v595 = vpop.permute.xlu0 %594
        %596 = vrot.lane.b32.xlu0 %v492, 127
        %v597 = vpop.permute.xlu0 %596
        %598 = vrot.lane.b32.xlu0 %v482, 127
        %v599 = vpop.permute.xlu0 %598
        %600 = vrot.lane.b32.xlu0 %v483, 127
        %v601 = vpop.permute.xlu0 %600
        %602 = vrot.lane.b32.xlu0 %v493, 127
        %v603 = vpop.permute.xlu0 %602
        %604 = vrot.lane.b32.xlu0 %v484, 127
        %v605 = vpop.permute.xlu0 %604
        %606 = vrot.lane.b32.xlu0 %v485, 127
        %v607 = vpop.permute.xlu0 %606
        %608 = vrot.lane.b32.xlu0 %v494, 127
        %v609 = vpop.permute.xlu0 %608
        %610 = vrot.lane.b32.xlu0 %v486, 127
        %v611 = vpop.permute.xlu0 %610
        %612 = vrot.lane.b32.xlu0 %v487, 127
        %v613 = vpop.permute.xlu0 %612
        %614 = vrot.lane.b32.xlu0 %v495, 127
        %v615 = vpop.permute.xlu0 %614
        %vm616 = vcmask 1039360
        %v617 = vsel %vm616, %v569, %v571
        %v618 = vsel %vm616, %v571, %v573
        %v619 = vsel %vm616, %v575, %v577
        %v620 = vsel %vm616, %v577, %v579
        %v621 = vsel %vm616, %v581, %v583
        %v622 = vsel %vm616, %v583, %v585
        %v623 = vsel %vm616, %v587, %v589
        %v624 = vsel %vm616, %v589, %v591
        %v625 = vsel %vm616, %v593, %v595
        %v626 = vsel %vm616, %v595, %v597
        %v627 = vsel %vm616, %v599, %v601
        %v628 = vsel %vm616, %v601, %v603
        %v629 = vsel %vm616, %v605, %v607
        %v630 = vsel %vm616, %v607, %v609
        %v631 = vsel %vm616, %v611, %v613
        %v632 = vsel %vm616, %v613, %v615
        %649 = vmatprep.subr.bf16.mxu0 %v618
        %650 = vmatpush1.bf16.msra.mxu0 %v617
        %651 = vmatprep.subr.bf16.mxu0 %v620
        %652 = vmatpush1.bf16.msra.mxu0 %v619
        %653 = vmatprep.subr.bf16.mxu0 %v622
        %654 = vmatpush1.bf16.msra.mxu0 %v621
        %655 = vmatprep.subr.bf16.mxu0 %v624
        %656 = vmatpush1.bf16.msra.mxu0 %v623
        %657 = vmatprep.subr.bf16.mxu0 %v626
        %658 = vmatpush1.bf16.msra.mxu0 %v625
        %659 = vmatprep.subr.bf16.mxu0 %v628
        %660 = vmatpush1.bf16.msra.mxu0 %v627
        %661 = vmatprep.subr.bf16.mxu0 %v630
        %662 = vmatpush1.bf16.msra.mxu0 %v629
        %663 = vmatprep.subr.bf16.mxu0 %v632
        %664 = vmatpush1.bf16.msra.mxu0 %v631
        %665 = vmatprep.subr.bf16.mxu0 0
        %666 = vmatpush1.bf16.msra.mxu0 0
        %667 = vmatprep.subr.bf16.mxu0 0
        %668 = vmatpush1.bf16.msra.mxu0 0
        %669 = vmatprep.subr.bf16.mxu0 0
        %670 = vmatpush1.bf16.msra.mxu0 0
        %671 = vmatprep.subr.bf16.mxu0 0
        %672 = vmatpush1.bf16.msra.mxu0 0
        %673 = vmatprep.subr.bf16.mxu0 0
        %674 = vmatpush1.bf16.msra.mxu0 0
        %675 = vmatprep.subr.bf16.mxu0 0
        %676 = vmatpush1.bf16.msra.mxu0 0
        %677 = vmatprep.subr.bf16.mxu0 0
        %678 = vmatpush1.bf16.msra.mxu0 0
        %679 = vmatprep.subr.bf16.mxu0 0
        %680 = vmatpush1.bf16.msra.mxu0 0
        %681 = vmatprep.mubr.bf16.mxu0 0
        %682 = vmatmul.mubr.bf16.gmra.mrb[0].mxu0 %v528
        %v683 = vpop.f32.mrb[0].mxu0
        %v684 = vadd.f32 0.0, %v683
        %v685 = vpop.f32.mrb[0].mxu0
        %v686 = vadd.f32 0.0, %v685
        %v687 = vpop.f32.mrb[0].mxu0
        %v688 = vadd.f32 0.0, %v687
        %v689 = vpop.f32.mrb[0].mxu0
        %v690 = vadd.f32 0.0, %v689
        %691 = vmatprep.mubr.bf16.mxu0 0
        %692 = vmatmul.mubr.bf16.gmra.mrb[0].mxu0 %v529
        %v693 = vpop.f32.mrb[0].mxu0
        %v694 = vadd.f32 0.0, %v693
        %v695 = vpop.f32.mrb[0].mxu0
        %v696 = vadd.f32 0.0, %v695
        %v697 = vpop.f32.mrb[0].mxu0
        %v698 = vadd.f32 0.0, %v697
        %v699 = vpop.f32.mrb[0].mxu0
        %v700 = vadd.f32 0.0, %v699
        %701 = vmatprep.mubr.bf16.mxu0 0
        %702 = vmatmul.mubr.bf16.gmra.mrb[0].mxu0 %v530
        %v703 = vpop.f32.mrb[0].mxu0
        %v704 = vadd.f32 0.0, %v703
        %v705 = vpop.f32.mrb[0].mxu0
        %v706 = vadd.f32 0.0, %v705
        %v707 = vpop.f32.mrb[0].mxu0
        %v708 = vadd.f32 0.0, %v707
        %v709 = vpop.f32.mrb[0].mxu0
        %v710 = vadd.f32 0.0, %v709
        %711 = vmatprep.mubr.bf16.mxu0 0
        %712 = vmatmul.mubr.bf16.gmra.mrb[0].mxu0 %v531
        %v713 = vpop.f32.mrb[0].mxu0
        %v714 = vadd.f32 0.0, %v713
        %v715 = vpop.f32.mrb[0].mxu0
        %v716 = vadd.f32 0.0, %v715
        %v717 = vpop.f32.mrb[0].mxu0
        %v718 = vadd.f32 0.0, %v717
        %v719 = vpop.f32.mrb[0].mxu0
        %v720 = vadd.f32 0.0, %v719
        %721 = vmatprep.mubr.bf16.mxu0 0
        %722 = vmatmul.mubr.bf16.gmra.mrb[0].mxu0 %v532
        %v723 = vpop.f32.mrb[0].mxu0
        %v724 = vadd.f32 0.0, %v723
        %v725 = vpop.f32.mrb[0].mxu0
        %v726 = vadd.f32 0.0, %v725
        %v727 = vpop.f32.mrb[0].mxu0
        %v728 = vadd.f32 0.0, %v727
        %v729 = vpop.f32.mrb[0].mxu0
        %v730 = vadd.f32 0.0, %v729
        %731 = vmatprep.mubr.bf16.mxu0 0
        %732 = vmatmul.mubr.bf16.gmra.mrb[0].mxu0 %v533
        %v733 = vpop.f32.mrb[0].mxu0
        %v734 = vadd.f32 0.0, %v733
        %v735 = vpop.f32.mrb[0].mxu0
        %v736 = vadd.f32 0.0, %v735
        %v737 = vpop.f32.mrb[0].mxu0
        %v738 = vadd.f32 0.0, %v737
        %v739 = vpop.f32.mrb[0].mxu0
        %v740 = vadd.f32 0.0, %v739
        %741 = vmatprep.mubr.bf16.mxu0 0
        %742 = vmatmul.mubr.bf16.gmra.mrb[0].mxu0 %v534
        %v743 = vpop.f32.mrb[0].mxu0
        %v744 = vadd.f32 0.0, %v743
        %v745 = vpop.f32.mrb[0].mxu0
        %v746 = vadd.f32 0.0, %v745
        %v747 = vpop.f32.mrb[0].mxu0
        %v748 = vadd.f32 0.0, %v747
        %v749 = vpop.f32.mrb[0].mxu0
        %v750 = vadd.f32 0.0, %v749
        %751 = vmatprep.mubr.bf16.mxu0 0
        %752 = vmatmul.mubr.bf16.gmra.mrb[0].mxu0 %v535
        %v753 = vpop.f32.mrb[0].mxu0
        %v754 = vadd.f32 0.0, %v753
        %v755 = vpop.f32.mrb[0].mxu0
        %v756 = vadd.f32 0.0, %v755
        %v757 = vpop.f32.mrb[0].mxu0
        %v758 = vadd.f32 0.0, %v757
        %v759 = vpop.f32.mrb[0].mxu0
        %v760 = vadd.f32 0.0, %v759
        %761 = vdwg.mxu0
        %v778 = vunpack.c.l.b16 %v220
        %v779 = vunpack.c.l.b16 %v221
        %v780 = vunpack.c.l.b16 %v222
        %v781 = vunpack.c.l.b16 %v223
        %v782 = vunpack.c.l.b16 %v224
        %v783 = vunpack.c.l.b16 %v225
        %v784 = vunpack.c.l.b16 %v226
        %v785 = vunpack.c.l.b16 %v227
        %v786 = vunpack.c.l.b16 %v228
        %v787 = vunpack.c.l.b16 %v229
        %v788 = vunpack.c.l.b16 %v230
        %v789 = vunpack.c.l.b16 %v231
        %v790 = vunpack.c.l.b16 %v232
        %v791 = vunpack.c.l.b16 %v233
        %v792 = vunpack.c.l.b16 %v234
        %v793 = vunpack.c.l.b16 %v235
        %v794 = vpack.c.b16 %v779, %v778
        %v795 = vpack.c.b16 %v781, %v780
        %v796 = vpack.c.b16 %v783, %v782
        %v797 = vpack.c.b16 %v785, %v784
        %v798 = vpack.c.b16 %v787, %v786
        %v799 = vpack.c.b16 %v789, %v788
        %v800 = vpack.c.b16 %v791, %v790
        %v801 = vpack.c.b16 %v793, %v792
        %810 = vmatprep.subr.bf16.mxu0 %v473
        %811 = vmatpush1.bf16.msra.mxu0 %v472
        %812 = vmatprep.subr.bf16.mxu0 %v475
        %813 = vmatpush1.bf16.msra.mxu0 %v474
        %814 = vmatprep.subr.bf16.mxu0 %v477
        %815 = vmatpush1.bf16.msra.mxu0 %v476
        %816 = vmatprep.subr.bf16.mxu0 %v479
        %817 = vmatpush1.bf16.msra.mxu0 %v478
        %818 = vmatprep.subr.bf16.mxu0 %v481
        %819 = vmatpush1.bf16.msra.mxu0 %v480
        %820 = vmatprep.subr.bf16.mxu0 %v483
        %821 = vmatpush1.bf16.msra.mxu0 %v482
        %822 = vmatprep.subr.bf16.mxu0 %v485
        %823 = vmatpush1.bf16.msra.mxu0 %v484
        %824 = vmatprep.subr.bf16.mxu0 %v487
        %825 = vmatpush1.bf16.msra.mxu0 %v486
        %826 = vmatprep.subr.bf16.mxu0 0
        %827 = vmatpush1.bf16.msra.mxu0 0
        %828 = vmatprep.subr.bf16.mxu0 0
        %829 = vmatpush1.bf16.msra.mxu0 0
        %830 = vmatprep.subr.bf16.mxu0 0
        %831 = vmatpush1.bf16.msra.mxu0 0
        %832 = vmatprep.subr.bf16.mxu0 0
        %833 = vmatpush1.bf16.msra.mxu0 0
        %834 = vmatprep.subr.bf16.mxu0 0
        %835 = vmatpush1.bf16.msra.mxu0 0
        %836 = vmatprep.subr.bf16.mxu0 0
        %837 = vmatpush1.bf16.msra.mxu0 0
        %838 = vmatprep.subr.bf16.mxu0 0
        %839 = vmatpush1.bf16.msra.mxu0 0
        %840 = vmatprep.subr.bf16.mxu0 0
        %841 = vmatpush1.bf16.msra.mxu0 0
        %842 = vmatprep.mubr.bf16.mxu0 0
        %843 = vmatmul.mubr.bf16.gmra.mrb[0].mxu0 %v794
        %v844 = vpop.f32.mrb[0].mxu0
        %v845 = vadd.f32 %v684, %v844
        %v846 = vpop.f32.mrb[0].mxu0
        %v847 = vadd.f32 %v686, %v846
        %v848 = vpop.f32.mrb[0].mxu0
        %v849 = vadd.f32 %v688, %v848
        %v850 = vpop.f32.mrb[0].mxu0
        %v851 = vadd.f32 %v690, %v850
        %852 = vmatprep.mubr.bf16.mxu0 0
        %853 = vmatmul.mubr.bf16.gmra.mrb[0].mxu0 %v795
        %v854 = vpop.f32.mrb[0].mxu0
        %v855 = vadd.f32 %v694, %v854
        %v856 = vpop.f32.mrb[0].mxu0
        %v857 = vadd.f32 %v696, %v856
        %v858 = vpop.f32.mrb[0].mxu0
        %v859 = vadd.f32 %v698, %v858
        %v860 = vpop.f32.mrb[0].mxu0
        %v861 = vadd.f32 %v700, %v860
        %862 = vmatprep.mubr.bf16.mxu0 0
        %863 = vmatmul.mubr.bf16.gmra.mrb[0].mxu0 %v796
        %v864 = vpop.f32.mrb[0].mxu0
        %v865 = vadd.f32 %v704, %v864
        %v866 = vpop.f32.mrb[0].mxu0
        %v867 = vadd.f32 %v706, %v866
        %v868 = vpop.f32.mrb[0].mxu0
        %v869 = vadd.f32 %v708, %v868
        %v870 = vpop.f32.mrb[0].mxu0
        %v871 = vadd.f32 %v710, %v870
        %872 = vmatprep.mubr.bf16.mxu0 0
        %873 = vmatmul.mubr.bf16.gmra.mrb[0].mxu0 %v797
        %v874 = vpop.f32.mrb[0].mxu0
        %v875 = vadd.f32 %v714, %v874
        %v876 = vpop.f32.mrb[0].mxu0
        %v877 = vadd.f32 %v716, %v876
        %v878 = vpop.f32.mrb[0].mxu0
        %v879 = vadd.f32 %v718, %v878
        %v880 = vpop.f32.mrb[0].mxu0
        %v881 = vadd.f32 %v720, %v880
        %882 = vmatprep.mubr.bf16.mxu0 0
        %883 = vmatmul.mubr.bf16.gmra.mrb[0].mxu0 %v798
        %v884 = vpop.f32.mrb[0].mxu0
        %v885 = vadd.f32 %v724, %v884
        %v886 = vpop.f32.mrb[0].mxu0
        %v887 = vadd.f32 %v726, %v886
        %v888 = vpop.f32.mrb[0].mxu0
        %v889 = vadd.f32 %v728, %v888
        %v890 = vpop.f32.mrb[0].mxu0
        %v891 = vadd.f32 %v730, %v890
        %892 = vmatprep.mubr.bf16.mxu0 0
        %893 = vmatmul.mubr.bf16.gmra.mrb[0].mxu0 %v799
        %v894 = vpop.f32.mrb[0].mxu0
        %v895 = vadd.f32 %v734, %v894
        %v896 = vpop.f32.mrb[0].mxu0
        %v897 = vadd.f32 %v736, %v896
        %v898 = vpop.f32.mrb[0].mxu0
        %v899 = vadd.f32 %v738, %v898
        %v900 = vpop.f32.mrb[0].mxu0
        %v901 = vadd.f32 %v740, %v900
        %902 = vmatprep.mubr.bf16.mxu0 0
        %903 = vmatmul.mubr.bf16.gmra.mrb[0].mxu0 %v800
        %v904 = vpop.f32.mrb[0].mxu0
        %v905 = vadd.f32 %v744, %v904
        %v906 = vpop.f32.mrb[0].mxu0
        %v907 = vadd.f32 %v746, %v906
        %v908 = vpop.f32.mrb[0].mxu0
        %v909 = vadd.f32 %v748, %v908
        %v910 = vpop.f32.mrb[0].mxu0
        %v911 = vadd.f32 %v750, %v910
        %912 = vmatprep.mubr.bf16.mxu0 0
        %913 = vmatmul.mubr.bf16.gmra.mrb[0].mxu0 %v801
        %v914 = vpop.f32.mrb[0].mxu0
        %v915 = vadd.f32 %v754, %v914
        %v916 = vpop.f32.mrb[0].mxu0
        %v917 = vadd.f32 %v756, %v916
        %v918 = vpop.f32.mrb[0].mxu0
        %v919 = vadd.f32 %v758, %v918
        %v920 = vpop.f32.mrb[0].mxu0
        %v921 = vadd.f32 %v760, %v920
        %922 = vdwg.mxu0
        %v939 = vunpack.c.l.b16 %v252
        %v940 = vunpack.c.l.b16 %v253
        %v941 = vunpack.c.l.b16 %v254
        %v942 = vunpack.c.l.b16 %v255
        %v943 = vunpack.c.l.b16 %v256
        %v944 = vunpack.c.l.b16 %v257
        %v945 = vunpack.c.l.b16 %v258
        %v946 = vunpack.c.l.b16 %v259
        %v947 = vunpack.c.l.b16 %v260
        %v948 = vunpack.c.l.b16 %v261
        %v949 = vunpack.c.l.b16 %v262
        %v950 = vunpack.c.l.b16 %v263
        %v951 = vunpack.c.l.b16 %v264
        %v952 = vunpack.c.l.b16 %v265
        %v953 = vunpack.c.l.b16 %v266
        %v954 = vunpack.c.l.b16 %v267
        %v955 = vpack.c.b16 %v940, %v939
        %v956 = vpack.c.b16 %v942, %v941
        %v957 = vpack.c.b16 %v944, %v943
        %v958 = vpack.c.b16 %v946, %v945
        %v959 = vpack.c.b16 %v948, %v947
        %v960 = vpack.c.b16 %v950, %v949
        %v961 = vpack.c.b16 %v952, %v951
        %v962 = vpack.c.b16 %v954, %v953
        %971 = vrot.lane.b32.xlu0 %v472, 126
        %v972 = vpop.permute.xlu0 %971
        %973 = vrot.lane.b32.xlu0 %v473, 126
        %v974 = vpop.permute.xlu0 %973
        %975 = vrot.lane.b32.xlu0 %v488, 126
        %v976 = vpop.permute.xlu0 %975
        %977 = vrot.lane.b32.xlu0 %v474, 126
        %v978 = vpop.permute.xlu0 %977
        %979 = vrot.lane.b32.xlu0 %v475, 126
        %v980 = vpop.permute.xlu0 %979
        %981 = vrot.lane.b32.xlu0 %v489, 126
        %v982 = vpop.permute.xlu0 %981
        %983 = vrot.lane.b32.xlu0 %v476, 126
        %v984 = vpop.permute.xlu0 %983
        %985 = vrot.lane.b32.xlu0 %v477, 126
        %v986 = vpop.permute.xlu0 %985
        %987 = vrot.lane.b32.xlu0 %v490, 126
        %v988 = vpop.permute.xlu0 %987
        %989 = vrot.lane.b32.xlu0 %v478, 126
        %v990 = vpop.permute.xlu0 %989
        %991 = vrot.lane.b32.xlu0 %v479, 126
        %v992 = vpop.permute.xlu0 %991
        %993 = vrot.lane.b32.xlu0 %v491, 126
        %v994 = vpop.permute.xlu0 %993
        %995 = vrot.lane.b32.xlu0 %v480, 126
        %v996 = vpop.permute.xlu0 %995
        %997 = vrot.lane.b32.xlu0 %v481, 126
        %v998 = vpop.permute.xlu0 %997
        %999 = vrot.lane.b32.xlu0 %v492, 126
        %v1000 = vpop.permute.xlu0 %999
        %1001 = vrot.lane.b32.xlu0 %v482, 126
        %v1002 = vpop.permute.xlu0 %1001
        %1003 = vrot.lane.b32.xlu0 %v483, 126
        %v1004 = vpop.permute.xlu0 %1003
        %1005 = vrot.lane.b32.xlu0 %v493, 126
        %v1006 = vpop.permute.xlu0 %1005
        %1007 = vrot.lane.b32.xlu0 %v484, 126
        %v1008 = vpop.permute.xlu0 %1007
        %1009 = vrot.lane.b32.xlu0 %v485, 126
        %v1010 = vpop.permute.xlu0 %1009
        %1011 = vrot.lane.b32.xlu0 %v494, 126
        %v1012 = vpop.permute.xlu0 %1011
        %1013 = vrot.lane.b32.xlu0 %v486, 126
        %v1014 = vpop.permute.xlu0 %1013
        %1015 = vrot.lane.b32.xlu0 %v487, 126
        %v1016 = vpop.permute.xlu0 %1015
        %1017 = vrot.lane.b32.xlu0 %v495, 126
        %v1018 = vpop.permute.xlu0 %1017
        %vm1019 = vcmask 1031168
        %v1020 = vsel %vm1019, %v972, %v974
        %v1021 = vsel %vm1019, %v974, %v976
        %v1022 = vsel %vm1019, %v978, %v980
        %v1023 = vsel %vm1019, %v980, %v982
        %v1024 = vsel %vm1019, %v984, %v986
        %v1025 = vsel %vm1019, %v986, %v988
        %v1026 = vsel %vm1019, %v990, %v992
        %v1027 = vsel %vm1019, %v992, %v994
        %v1028 = vsel %vm1019, %v996, %v998
        %v1029 = vsel %vm1019, %v998, %v1000
        %v1030 = vsel %vm1019, %v1002, %v1004
        %v1031 = vsel %vm1019, %v1004, %v1006
        %v1032 = vsel %vm1019, %v1008, %v1010
        %v1033 = vsel %vm1019, %v1010, %v1012
        %v1034 = vsel %vm1019, %v1014, %v1016
        %v1035 = vsel %vm1019, %v1016, %v1018
        %1052 = vmatprep.subr.bf16.mxu0 %v1021
        %1053 = vmatpush1.bf16.msra.mxu0 %v1020
        %1054 = vmatprep.subr.bf16.mxu0 %v1023
        %1055 = vmatpush1.bf16.msra.mxu0 %v1022
        %1056 = vmatprep.subr.bf16.mxu0 %v1025
        %1057 = vmatpush1.bf16.msra.mxu0 %v1024
        %1058 = vmatprep.subr.bf16.mxu0 %v1027
        %1059 = vmatpush1.bf16.msra.mxu0 %v1026
        %1060 = vmatprep.subr.bf16.mxu0 %v1029
        %1061 = vmatpush1.bf16.msra.mxu0 %v1028
        %1062 = vmatprep.subr.bf16.mxu0 %v1031
        %1063 = vmatpush1.bf16.msra.mxu0 %v1030
        %1064 = vmatprep.subr.bf16.mxu0 %v1033
        %1065 = vmatpush1.bf16.msra.mxu0 %v1032
        %1066 = vmatprep.subr.bf16.mxu0 %v1035
        %1067 = vmatpush1.bf16.msra.mxu0 %v1034
        %1068 = vmatprep.subr.bf16.mxu0 0
        %1069 = vmatpush1.bf16.msra.mxu0 0
        %1070 = vmatprep.subr.bf16.mxu0 0
        %1071 = vmatpush1.bf16.msra.mxu0 0
        %1072 = vmatprep.subr.bf16.mxu0 0
        %1073 = vmatpush1.bf16.msra.mxu0 0
        %1074 = vmatprep.subr.bf16.mxu0 0
        %1075 = vmatpush1.bf16.msra.mxu0 0
        %1076 = vmatprep.subr.bf16.mxu0 0
        %1077 = vmatpush1.bf16.msra.mxu0 0
        %1078 = vmatprep.subr.bf16.mxu0 0
        %1079 = vmatpush1.bf16.msra.mxu0 0
        %1080 = vmatprep.subr.bf16.mxu0 0
        %1081 = vmatpush1.bf16.msra.mxu0 0
        %1082 = vmatprep.subr.bf16.mxu0 0
        %1083 = vmatpush1.bf16.msra.mxu0 0
        %1084 = vmatprep.mubr.bf16.mxu0 0
        %1085 = vmatmul.mubr.bf16.gmra.mrb[0].mxu0 %v955
        %v1086 = vpop.f32.mrb[0].mxu0
        %v1087 = vadd.f32 0.0, %v1086
        %v1088 = vpop.f32.mrb[0].mxu0
        %v1089 = vadd.f32 0.0, %v1088
        %v1090 = vpop.f32.mrb[0].mxu0
        %v1091 = vadd.f32 0.0, %v1090
        %v1092 = vpop.f32.mrb[0].mxu0
        %v1093 = vadd.f32 0.0, %v1092
        %1094 = vmatprep.mubr.bf16.mxu0 0
        %1095 = vmatmul.mubr.bf16.gmra.mrb[0].mxu0 %v956
        %v1096 = vpop.f32.mrb[0].mxu0
        %v1097 = vadd.f32 0.0, %v1096
        %v1098 = vpop.f32.mrb[0].mxu0
        %v1099 = vadd.f32 0.0, %v1098
        %v1100 = vpop.f32.mrb[0].mxu0
        %v1101 = vadd.f32 0.0, %v1100
        %v1102 = vpop.f32.mrb[0].mxu0
        %v1103 = vadd.f32 0.0, %v1102
        %1104 = vmatprep.mubr.bf16.mxu0 0
        %1105 = vmatmul.mubr.bf16.gmra.mrb[0].mxu0 %v957
        %v1106 = vpop.f32.mrb[0].mxu0
        %v1107 = vadd.f32 0.0, %v1106
        %v1108 = vpop.f32.mrb[0].mxu0
        %v1109 = vadd.f32 0.0, %v1108
        %v1110 = vpop.f32.mrb[0].mxu0
        %v1111 = vadd.f32 0.0, %v1110
        %v1112 = vpop.f32.mrb[0].mxu0
        %v1113 = vadd.f32 0.0, %v1112
        %1114 = vmatprep.mubr.bf16.mxu0 0
        %1115 = vmatmul.mubr.bf16.gmra.mrb[0].mxu0 %v958
        %v1116 = vpop.f32.mrb[0].mxu0
        %v1117 = vadd.f32 0.0, %v1116
        %v1118 = vpop.f32.mrb[0].mxu0
        %v1119 = vadd.f32 0.0, %v1118
        %v1120 = vpop.f32.mrb[0].mxu0
        %v1121 = vadd.f32 0.0, %v1120
        %v1122 = vpop.f32.mrb[0].mxu0
        %v1123 = vadd.f32 0.0, %v1122
        %1124 = vmatprep.mubr.bf16.mxu0 0
        %1125 = vmatmul.mubr.bf16.gmra.mrb[0].mxu0 %v959
        %v1126 = vpop.f32.mrb[0].mxu0
        %v1127 = vadd.f32 0.0, %v1126
        %v1128 = vpop.f32.mrb[0].mxu0
        %v1129 = vadd.f32 0.0, %v1128
        %v1130 = vpop.f32.mrb[0].mxu0
        %v1131 = vadd.f32 0.0, %v1130
        %v1132 = vpop.f32.mrb[0].mxu0
        %v1133 = vadd.f32 0.0, %v1132
        %1134 = vmatprep.mubr.bf16.mxu0 0
        %1135 = vmatmul.mubr.bf16.gmra.mrb[0].mxu0 %v960
        %v1136 = vpop.f32.mrb[0].mxu0
        %v1137 = vadd.f32 0.0, %v1136
        %v1138 = vpop.f32.mrb[0].mxu0
        %v1139 = vadd.f32 0.0, %v1138
        %v1140 = vpop.f32.mrb[0].mxu0
        %v1141 = vadd.f32 0.0, %v1140
        %v1142 = vpop.f32.mrb[0].mxu0
        %v1143 = vadd.f32 0.0, %v1142
        %1144 = vmatprep.mubr.bf16.mxu0 0
        %1145 = vmatmul.mubr.bf16.gmra.mrb[0].mxu0 %v961
        %v1146 = vpop.f32.mrb[0].mxu0
        %v1147 = vadd.f32 0.0, %v1146
        %v1148 = vpop.f32.mrb[0].mxu0
        %v1149 = vadd.f32 0.0, %v1148
        %v1150 = vpop.f32.mrb[0].mxu0
        %v1151 = vadd.f32 0.0, %v1150
        %v1152 = vpop.f32.mrb[0].mxu0
        %v1153 = vadd.f32 0.0, %v1152
        %1154 = vmatprep.mubr.bf16.mxu0 0
        %1155 = vmatmul.mubr.bf16.gmra.mrb[0].mxu0 %v962
        %v1156 = vpop.f32.mrb[0].mxu0
        %v1157 = vadd.f32 0.0, %v1156
        %v1158 = vpop.f32.mrb[0].mxu0
        %v1159 = vadd.f32 0.0, %v1158
        %v1160 = vpop.f32.mrb[0].mxu0
        %v1161 = vadd.f32 0.0, %v1160
        %v1162 = vpop.f32.mrb[0].mxu0
        %v1163 = vadd.f32 0.0, %v1162
        %1164 = vdwg.mxu0
        %v1165 = vadd.f32 %v845, %v1087
        %v1166 = vadd.f32 %v847, %v1089
        %v1167 = vadd.f32 %v849, %v1091
        %v1168 = vadd.f32 %v851, %v1093
        %v1169 = vadd.f32 %v855, %v1097
        %v1170 = vadd.f32 %v857, %v1099
        %v1171 = vadd.f32 %v859, %v1101
        %v1172 = vadd.f32 %v861, %v1103
        %v1173 = vadd.f32 %v865, %v1107
        %v1174 = vadd.f32 %v867, %v1109
        %v1175 = vadd.f32 %v869, %v1111
        %v1176 = vadd.f32 %v871, %v1113
        %v1177 = vadd.f32 %v875, %v1117
        %v1178 = vadd.f32 %v877, %v1119
        %v1179 = vadd.f32 %v879, %v1121
        %v1180 = vadd.f32 %v881, %v1123
        %v1181 = vadd.f32 %v885, %v1127
        %v1182 = vadd.f32 %v887, %v1129
        %v1183 = vadd.f32 %v889, %v1131
        %v1184 = vadd.f32 %v891, %v1133
        %v1185 = vadd.f32 %v895, %v1137
        %v1186 = vadd.f32 %v897, %v1139
        %v1187 = vadd.f32 %v899, %v1141
        %v1188 = vadd.f32 %v901, %v1143
        %v1189 = vadd.f32 %v905, %v1147
        %v1190 = vadd.f32 %v907, %v1149
        %v1191 = vadd.f32 %v909, %v1151
        %v1192 = vadd.f32 %v911, %v1153
        %v1193 = vadd.f32 %v915, %v1157
        %v1194 = vadd.f32 %v917, %v1159
        %v1195 = vadd.f32 %v919, %v1161
        %v1196 = vadd.f32 %v921, %v1163
        %1198 = vset.pattern.permute.xlu0 0
        %1199 = vperm.xlu0 %1198, %v268
        %v1200 = vpop.permute.xlu0 %1199
        %1203 = vset.pattern.permute.xlu0 0
        %1204 = vperm.xlu0 %1203, %v269
        %v1205 = vpop.permute.xlu0 %1204
        %1208 = vset.pattern.permute.xlu0 0
        %1209 = vperm.xlu0 %1208, %v270
        %v1210 = vpop.permute.xlu0 %1209
        %1213 = vset.pattern.permute.xlu0 0
        %1214 = vperm.xlu0 %1213, %v271
        %v1215 = vpop.permute.xlu0 %1214
        %1218 = vset.pattern.permute.xlu0 0
        %1219 = vperm.xlu0 %1218, %v272
        %v1220 = vpop.permute.xlu0 %1219
        %1223 = vset.pattern.permute.xlu0 0
        %1224 = vperm.xlu0 %1223, %v273
        %v1225 = vpop.permute.xlu0 %1224
        %1228 = vset.pattern.permute.xlu0 0
        %1229 = vperm.xlu0 %1228, %v274
        %v1230 = vpop.permute.xlu0 %1229
        %1233 = vset.pattern.permute.xlu0 0
        %1234 = vperm.xlu0 %1233, %v275
        %v1235 = vpop.permute.xlu0 %1234
        %1238 = vset.pattern.permute.xlu0 0
        %1239 = vperm.xlu0 %1238, %v276
        %v1240 = vpop.permute.xlu0 %1239
        %1243 = vset.pattern.permute.xlu0 0
        %1244 = vperm.xlu0 %1243, %v277
        %v1245 = vpop.permute.xlu0 %1244
        %1248 = vset.pattern.permute.xlu0 0
        %1249 = vperm.xlu0 %1248, %v278
        %v1250 = vpop.permute.xlu0 %1249
        %1253 = vset.pattern.permute.xlu0 0
        %1254 = vperm.xlu0 %1253, %v279
        %v1255 = vpop.permute.xlu0 %1254
        %1258 = vset.pattern.permute.xlu0 0
        %1259 = vperm.xlu0 %1258, %v280
        %v1260 = vpop.permute.xlu0 %1259
        %1263 = vset.pattern.permute.xlu0 0
        %1264 = vperm.xlu0 %1263, %v281
        %v1265 = vpop.permute.xlu0 %1264
        %1268 = vset.pattern.permute.xlu0 0
        %1269 = vperm.xlu0 %1268, %v282
        %v1270 = vpop.permute.xlu0 %1269
        %1273 = vset.pattern.permute.xlu0 0
        %1274 = vperm.xlu0 %1273, %v283
        %v1275 = vpop.permute.xlu0 %1274
        %v1277 = vmul.f32 %v1165, %v1200
        %v1278 = vmul.f32 %v1166, %v1200
        %v1279 = vmul.f32 %v1167, %v1205
        %v1280 = vmul.f32 %v1168, %v1205
        %v1281 = vmul.f32 %v1169, %v1210
        %v1282 = vmul.f32 %v1170, %v1210
        %v1283 = vmul.f32 %v1171, %v1215
        %v1284 = vmul.f32 %v1172, %v1215
        %v1285 = vmul.f32 %v1173, %v1220
        %v1286 = vmul.f32 %v1174, %v1220
        %v1287 = vmul.f32 %v1175, %v1225
        %v1288 = vmul.f32 %v1176, %v1225
        %v1289 = vmul.f32 %v1177, %v1230
        %v1290 = vmul.f32 %v1178, %v1230
        %v1291 = vmul.f32 %v1179, %v1235
        %v1292 = vmul.f32 %v1180, %v1235
        %v1293 = vmul.f32 %v1181, %v1240
        %v1294 = vmul.f32 %v1182, %v1240
        %v1295 = vmul.f32 %v1183, %v1245
        %v1296 = vmul.f32 %v1184, %v1245
        %v1297 = vmul.f32 %v1185, %v1250
        %v1298 = vmul.f32 %v1186, %v1250
        %v1299 = vmul.f32 %v1187, %v1255
        %v1300 = vmul.f32 %v1188, %v1255
        %v1301 = vmul.f32 %v1189, %v1260
        %v1302 = vmul.f32 %v1190, %v1260
        %v1303 = vmul.f32 %v1191, %v1265
        %v1304 = vmul.f32 %v1192, %v1265
        %v1305 = vmul.f32 %v1193, %v1270
        %v1306 = vmul.f32 %v1194, %v1270
        %v1307 = vmul.f32 %v1195, %v1275
        %v1308 = vmul.f32 %v1196, %v1275
        %1310 = vset.pattern.permute.xlu0 0
        %1311 = vperm.xlu0 %1310, %v284
        %v1312 = vpop.permute.xlu0 %1311
        %1315 = vset.pattern.permute.xlu0 0
        %1316 = vperm.xlu0 %1315, %v285
        %v1317 = vpop.permute.xlu0 %1316
        %1320 = vset.pattern.permute.xlu0 0
        %1321 = vperm.xlu0 %1320, %v286
        %v1322 = vpop.permute.xlu0 %1321
        %1325 = vset.pattern.permute.xlu0 0
        %1326 = vperm.xlu0 %1325, %v287
        %v1327 = vpop.permute.xlu0 %1326
        %1330 = vset.pattern.permute.xlu0 0
        %1331 = vperm.xlu0 %1330, %v288
        %v1332 = vpop.permute.xlu0 %1331
        %1335 = vset.pattern.permute.xlu0 0
        %1336 = vperm.xlu0 %1335, %v289
        %v1337 = vpop.permute.xlu0 %1336
        %1340 = vset.pattern.permute.xlu0 0
        %1341 = vperm.xlu0 %1340, %v290
        %v1342 = vpop.permute.xlu0 %1341
        %1345 = vset.pattern.permute.xlu0 0
        %1346 = vperm.xlu0 %1345, %v291
        %v1347 = vpop.permute.xlu0 %1346
        %1350 = vset.pattern.permute.xlu0 0
        %1351 = vperm.xlu0 %1350, %v292
        %v1352 = vpop.permute.xlu0 %1351
        %1355 = vset.pattern.permute.xlu0 0
        %1356 = vperm.xlu0 %1355, %v293
        %v1357 = vpop.permute.xlu0 %1356
        %1360 = vset.pattern.permute.xlu0 0
        %1361 = vperm.xlu0 %1360, %v294
        %v1362 = vpop.permute.xlu0 %1361
        %1365 = vset.pattern.permute.xlu0 0
        %1366 = vperm.xlu0 %1365, %v295
        %v1367 = vpop.permute.xlu0 %1366
        %1370 = vset.pattern.permute.xlu0 0
        %1371 = vperm.xlu0 %1370, %v296
        %v1372 = vpop.permute.xlu0 %1371
        %1375 = vset.pattern.permute.xlu0 0
        %1376 = vperm.xlu0 %1375, %v297
        %v1377 = vpop.permute.xlu0 %1376
        %1380 = vset.pattern.permute.xlu0 0
        %1381 = vperm.xlu0 %1380, %v298
        %v1382 = vpop.permute.xlu0 %1381
        %1385 = vset.pattern.permute.xlu0 0
        %1386 = vperm.xlu0 %1385, %v299
        %v1387 = vpop.permute.xlu0 %1386
        %v1389 = vadd.f32 %v1277, %v1312
        %v1390 = vadd.f32 %v1278, %v1312
        %v1391 = vadd.f32 %v1279, %v1317
        %v1392 = vadd.f32 %v1280, %v1317
        %v1393 = vadd.f32 %v1281, %v1322
        %v1394 = vadd.f32 %v1282, %v1322
        %v1395 = vadd.f32 %v1283, %v1327
        %v1396 = vadd.f32 %v1284, %v1327
        %v1397 = vadd.f32 %v1285, %v1332
        %v1398 = vadd.f32 %v1286, %v1332
        %v1399 = vadd.f32 %v1287, %v1337
        %v1400 = vadd.f32 %v1288, %v1337
        %v1401 = vadd.f32 %v1289, %v1342
        %v1402 = vadd.f32 %v1290, %v1342
        %v1403 = vadd.f32 %v1291, %v1347
        %v1404 = vadd.f32 %v1292, %v1347
        %v1405 = vadd.f32 %v1293, %v1352
        %v1406 = vadd.f32 %v1294, %v1352
        %v1407 = vadd.f32 %v1295, %v1357
        %v1408 = vadd.f32 %v1296, %v1357
        %v1409 = vadd.f32 %v1297, %v1362
        %v1410 = vadd.f32 %v1298, %v1362
        %v1411 = vadd.f32 %v1299, %v1367
        %v1412 = vadd.f32 %v1300, %v1367
        %v1413 = vadd.f32 %v1301, %v1372
        %v1414 = vadd.f32 %v1302, %v1372
        %v1415 = vadd.f32 %v1303, %v1377
        %v1416 = vadd.f32 %v1304, %v1377
        %v1417 = vadd.f32 %v1305, %v1382
        %v1418 = vadd.f32 %v1306, %v1382
        %v1419 = vadd.f32 %v1307, %v1387
        %v1420 = vadd.f32 %v1308, %v1387
        %v1421 = vmax.f32 %v1389, 0.0
        %v1422 = vmax.f32 %v1390, 0.0
        %v1423 = vmax.f32 %v1391, 0.0
        %v1424 = vmax.f32 %v1392, 0.0
        %v1425 = vmax.f32 %v1393, 0.0
        %v1426 = vmax.f32 %v1394, 0.0
        %v1427 = vmax.f32 %v1395, 0.0
        %v1428 = vmax.f32 %v1396, 0.0
        %v1429 = vmax.f32 %v1397, 0.0
        %v1430 = vmax.f32 %v1398, 0.0
        %v1431 = vmax.f32 %v1399, 0.0
        %v1432 = vmax.f32 %v1400, 0.0
        %v1433 = vmax.f32 %v1401, 0.0
        %v1434 = vmax.f32 %v1402, 0.0
        %v1435 = vmax.f32 %v1403, 0.0
        %v1436 = vmax.f32 %v1404, 0.0
        %v1437 = vmax.f32 %v1405, 0.0
        %v1438 = vmax.f32 %v1406, 0.0
        %v1439 = vmax.f32 %v1407, 0.0
        %v1440 = vmax.f32 %v1408, 0.0
        %v1441 = vmax.f32 %v1409, 0.0
        %v1442 = vmax.f32 %v1410, 0.0
        %v1443 = vmax.f32 %v1411, 0.0
        %v1444 = vmax.f32 %v1412, 0.0
        %v1445 = vmax.f32 %v1413, 0.0
        %v1446 = vmax.f32 %v1414, 0.0
        %v1447 = vmax.f32 %v1415, 0.0
        %v1448 = vmax.f32 %v1416, 0.0
        %v1449 = vmax.f32 %v1417, 0.0
        %v1450 = vmax.f32 %v1418, 0.0
        %v1451 = vmax.f32 %v1419, 0.0
        %v1452 = vmax.f32 %v1420, 0.0
        %v1453 = vpack.c.bf16 %v1423, %v1421
        %v1454 = vpack.c.bf16 %v1424, %v1422
        %v1455 = vpack.c.bf16 %v1427, %v1425
        %v1456 = vpack.c.bf16 %v1428, %v1426
        %v1457 = vpack.c.bf16 %v1431, %v1429
        %v1458 = vpack.c.bf16 %v1432, %v1430
        %v1459 = vpack.c.bf16 %v1435, %v1433
        %v1460 = vpack.c.bf16 %v1436, %v1434
        %v1461 = vpack.c.bf16 %v1439, %v1437
        %v1462 = vpack.c.bf16 %v1440, %v1438
        %v1463 = vpack.c.bf16 %v1443, %v1441
        %v1464 = vpack.c.bf16 %v1444, %v1442
        %v1465 = vpack.c.bf16 %v1447, %v1445
        %v1466 = vpack.c.bf16 %v1448, %v1446
        %v1467 = vpack.c.bf16 %v1451, %v1449
        %v1468 = vpack.c.bf16 %v1452, %v1450
        %v1485 = vunpack.c.l.b16 %v1453
        %v1486 = vunpack.c.l.b16 %v1454
        %v1487 = vunpack.c.h.b16 %v1453
        %v1488 = vunpack.c.h.b16 %v1454
        %v1489 = vunpack.c.l.b16 %v1455
        %v1490 = vunpack.c.l.b16 %v1456
        %v1491 = vunpack.c.h.b16 %v1455
        %v1492 = vunpack.c.h.b16 %v1456
        %v1493 = vunpack.c.l.b16 %v1457
        %v1494 = vunpack.c.l.b16 %v1458
        %v1495 = vunpack.c.h.b16 %v1457
        %v1496 = vunpack.c.h.b16 %v1458
        %v1497 = vunpack.c.l.b16 %v1459
        %v1498 = vunpack.c.l.b16 %v1460
        %v1499 = vunpack.c.h.b16 %v1459
        %v1500 = vunpack.c.h.b16 %v1460
        %v1501 = vunpack.c.l.b16 %v1461
        %v1502 = vunpack.c.l.b16 %v1462
        %v1503 = vunpack.c.h.b16 %v1461
        %v1504 = vunpack.c.h.b16 %v1462
        %v1505 = vunpack.c.l.b16 %v1463
        %v1506 = vunpack.c.l.b16 %v1464
        %v1507 = vunpack.c.h.b16 %v1463
        %v1508 = vunpack.c.h.b16 %v1464
        %v1509 = vunpack.c.l.b16 %v1465
        %v1510 = vunpack.c.l.b16 %v1466
        %v1511 = vunpack.c.h.b16 %v1465
        %v1512 = vunpack.c.h.b16 %v1466
        %v1513 = vunpack.c.l.b16 %v1467
        %v1514 = vunpack.c.l.b16 %v1468
        %v1515 = vunpack.c.h.b16 %v1467
        %v1516 = vunpack.c.h.b16 %v1468
        %v1517 = vpack.c.b16 %v1486, %v1485
        %v1518 = vpack.c.b16 %v1488, %v1487
        %v1519 = vpack.c.b16 %v1490, %v1489
        %v1520 = vpack.c.b16 %v1492, %v1491
        %v1521 = vpack.c.b16 %v1494, %v1493
        %v1522 = vpack.c.b16 %v1496, %v1495
        %v1523 = vpack.c.b16 %v1498, %v1497
        %v1524 = vpack.c.b16 %v1500, %v1499
        %v1525 = vpack.c.b16 %v1502, %v1501
        %v1526 = vpack.c.b16 %v1504, %v1503
        %v1527 = vpack.c.b16 %v1506, %v1505
        %v1528 = vpack.c.b16 %v1508, %v1507
        %v1529 = vpack.c.b16 %v1510, %v1509
        %v1530 = vpack.c.b16 %v1512, %v1511
        %v1531 = vpack.c.b16 %v1514, %v1513
        %v1532 = vpack.c.b16 %v1516, %v1515
        %1549 = vst [vmem:[%s216] sm:$0xff] %v1517
        %1550 = vst [vmem:[%s216 + $0x8] sm:$0xff] %v1518
        %1551 = vst [vmem:[%s216 + $0x10] sm:$0xff] %v1519
        %1552 = vst [vmem:[%s216 + $0x18] sm:$0xff] %v1520
        %1553 = vst [vmem:[%s216 + $0x20] sm:$0xff] %v1521
        %1554 = vst [vmem:[%s216 + $0x28] sm:$0xff] %v1522
        %1555 = vst [vmem:[%s216 + $0x30] sm:$0xff] %v1523
        %1556 = vst [vmem:[%s216 + $0x38] sm:$0xff] %v1524
        %1557 = vst [vmem:[%s216 + $0x40] sm:$0xff] %v1525
        %1558 = vst [vmem:[%s216 + $0x48] sm:$0xff] %v1526
        %1559 = vst [vmem:[%s216 + $0x50] sm:$0xff] %v1527
        %1560 = vst [vmem:[%s216 + $0x58] sm:$0xff] %v1528
        %1561 = vst [vmem:[%s216 + $0x60] sm:$0xff] %v1529
        %1562 = vst [vmem:[%s216 + $0x68] sm:$0xff] %v1530
        %1563 = vst [vmem:[%s216 + $0x70] sm:$0xff] %v1531
        %1564 = vst [vmem:[%s216 + $0x78] sm:$0xff] %v1532
        %s1565 = scalar_lea.vmem %s192, 256 [#allocation3]
        %v1566 = vld [vmem:[%s1565] sm:$0xff]
        %v1567 = vld [vmem:[%s1565 + $0x8] sm:$0xff]
        %v1568 = vld [vmem:[%s1565 + $0x10] sm:$0xff]
        %v1569 = vld [vmem:[%s1565 + $0x18] sm:$0xff]
        %v1570 = vld [vmem:[%s1565 + $0x20] sm:$0xff]
        %v1571 = vld [vmem:[%s1565 + $0x28] sm:$0xff]
        %v1572 = vld [vmem:[%s1565 + $0x30] sm:$0xff]
        %v1573 = vld [vmem:[%s1565 + $0x38] sm:$0xff]
        %v1574 = vld [vmem:[%s1565 + $0x40] sm:$0xff]
        %v1575 = vld [vmem:[%s1565 + $0x48] sm:$0xff]
        %v1576 = vld [vmem:[%s1565 + $0x50] sm:$0xff]
        %v1577 = vld [vmem:[%s1565 + $0x58] sm:$0xff]
        %v1578 = vld [vmem:[%s1565 + $0x60] sm:$0xff]
        %v1579 = vld [vmem:[%s1565 + $0x68] sm:$0xff]
        %v1580 = vld [vmem:[%s1565 + $0x70] sm:$0xff]
        %v1581 = vld [vmem:[%s1565 + $0x78] sm:$0xff]
        %v1582 = vld [vmem:[%s1565 + $0x80] sm:$0xff]
        %v1583 = vld [vmem:[%s1565 + $0x88] sm:$0xff]
        %v1584 = vld [vmem:[%s1565 + $0x90] sm:$0xff]
        %v1585 = vld [vmem:[%s1565 + $0x98] sm:$0xff]
        %v1586 = vld [vmem:[%s1565 + $0xa0] sm:$0xff]
        %v1587 = vld [vmem:[%s1565 + $0xa8] sm:$0xff]
        %v1588 = vld [vmem:[%s1565 + $0xb0] sm:$0xff]
        %v1589 = vld [vmem:[%s1565 + $0xb8] sm:$0xff]
        %v1590 = vld [vmem:[%s1565 + $0xc0] sm:$0xff]
        %v1591 = vld [vmem:[%s1565 + $0xc8] sm:$0xff]
        %v1592 = vld [vmem:[%s1565 + $0xd0] sm:$0xff]
        %v1593 = vld [vmem:[%s1565 + $0xd8] sm:$0xff]
        %v1594 = vld [vmem:[%s1565 + $0xe0] sm:$0xff]
        %v1595 = vld [vmem:[%s1565 + $0xe8] sm:$0xff]
        %v1596 = vld [vmem:[%s1565 + $0xf0] sm:$0xff]
        %v1597 = vld [vmem:[%s1565 + $0xf8] sm:$0xff]
        %v1598 = vpack.c.bf16 %v1568, %v1566
        %v1599 = vpack.c.bf16 %v1569, %v1567
        %v1600 = vpack.c.bf16 %v1572, %v1570
        %v1601 = vpack.c.bf16 %v1573, %v1571
        %v1602 = vpack.c.bf16 %v1576, %v1574
        %v1603 = vpack.c.bf16 %v1577, %v1575
        %v1604 = vpack.c.bf16 %v1580, %v1578
        %v1605 = vpack.c.bf16 %v1581, %v1579
        %v1606 = vpack.c.bf16 %v1584, %v1582
        %v1607 = vpack.c.bf16 %v1585, %v1583
        %v1608 = vpack.c.bf16 %v1588, %v1586
        %v1609 = vpack.c.bf16 %v1589, %v1587
        %v1610 = vpack.c.bf16 %v1592, %v1590
        %v1611 = vpack.c.bf16 %v1593, %v1591
        %v1612 = vpack.c.bf16 %v1596, %v1594
        %v1613 = vpack.c.bf16 %v1597, %v1595
        %1630 = vrot.lane.b32.xlu0 %v1598, 1
        %v1631 = vpop.permute.xlu0 %1630
        %1632 = vrot.lane.b32.xlu0 %v1599, 1
        %v1633 = vpop.permute.xlu0 %1632
        %1634 = vrot.lane.b32.xlu0 %v1600, 1
        %v1635 = vpop.permute.xlu0 %1634
        %1636 = vrot.lane.b32.xlu0 %v1601, 1
        %v1637 = vpop.permute.xlu0 %1636
        %1638 = vrot.lane.b32.xlu0 %v1602, 1
        %v1639 = vpop.permute.xlu0 %1638
        %1640 = vrot.lane.b32.xlu0 %v1603, 1
        %v1641 = vpop.permute.xlu0 %1640
        %1642 = vrot.lane.b32.xlu0 %v1604, 1
        %v1643 = vpop.permute.xlu0 %1642
        %1644 = vrot.lane.b32.xlu0 %v1605, 1
        %v1645 = vpop.permute.xlu0 %1644
        %1646 = vrot.lane.b32.xlu0 %v1606, 1
        %v1647 = vpop.permute.xlu0 %1646
        %1648 = vrot.lane.b32.xlu0 %v1607, 1
        %v1649 = vpop.permute.xlu0 %1648
        %1650 = vrot.lane.b32.xlu0 %v1608, 1
        %v1651 = vpop.permute.xlu0 %1650
        %1652 = vrot.lane.b32.xlu0 %v1609, 1
        %v1653 = vpop.permute.xlu0 %1652
        %1654 = vrot.lane.b32.xlu0 %v1610, 1
        %v1655 = vpop.permute.xlu0 %1654
        %1656 = vrot.lane.b32.xlu0 %v1611, 1
        %v1657 = vpop.permute.xlu0 %1656
        %1658 = vrot.lane.b32.xlu0 %v1612, 1
        %v1659 = vpop.permute.xlu0 %1658
        %1660 = vrot.lane.b32.xlu0 %v1613, 1
        %v1661 = vpop.permute.xlu0 %1660
        %v1662 = vsel %vm414, %v1631, %v1633
        %v1663 = vsel %vm414, %v1635, %v1637
        %v1664 = vsel %vm414, %v1639, %v1641
        %v1665 = vsel %vm414, %v1643, %v1645
        %v1666 = vsel %vm414, %v1647, %v1649
        %v1667 = vsel %vm414, %v1651, %v1653
        %v1668 = vsel %vm414, %v1655, %v1657
        %v1669 = vsel %vm414, %v1659, %v1661
        %1694 = vst.msk [vmem:[#allocation2] sm:$0xff] %vm447, %v1631
        %1695 = vst [vmem:[#allocation2 + $0x8] sm:$0xff] %v1662
        %1696 = vst.msk [vmem:[#allocation2 + $0x10] sm:$0xff] %vm300, %v1633
        %1697 = vst.msk [vmem:[#allocation2 + $0x18] sm:$0xff] %vm447, %v1635
        %1698 = vst [vmem:[#allocation2 + $0x20] sm:$0xff] %v1663
        %1699 = vst.msk [vmem:[#allocation2 + $0x28] sm:$0xff] %vm300, %v1637
        %1700 = vst.msk [vmem:[#allocation2 + $0x30] sm:$0xff] %vm447, %v1639
        %1701 = vst [vmem:[#allocation2 + $0x38] sm:$0xff] %v1664
        %1702 = vst.msk [vmem:[#allocation2 + $0x40] sm:$0xff] %vm300, %v1641
        %1703 = vst.msk [vmem:[#allocation2 + $0x48] sm:$0xff] %vm447, %v1643
        %1704 = vst [vmem:[#allocation2 + $0x50] sm:$0xff] %v1665
        %1705 = vst.msk [vmem:[#allocation2 + $0x58] sm:$0xff] %vm300, %v1645
        %1706 = vst.msk [vmem:[#allocation2 + $0x60] sm:$0xff] %vm447, %v1647
        %1707 = vst [vmem:[#allocation2 + $0x68] sm:$0xff] %v1666
        %1708 = vst.msk [vmem:[#allocation2 + $0x70] sm:$0xff] %vm300, %v1649
        %1709 = vst.msk [vmem:[#allocation2 + $0x78] sm:$0xff] %vm447, %v1651
        %1710 = vst [vmem:[#allocation2 + $0x80] sm:$0xff] %v1667
        %1711 = vst.msk [vmem:[#allocation2 + $0x88] sm:$0xff] %vm300, %v1653
        %1712 = vst.msk [vmem:[#allocation2 + $0x90] sm:$0xff] %vm447, %v1655
        %1713 = vst [vmem:[#allocation2 + $0x98] sm:$0xff] %v1668
        %1714 = vst.msk [vmem:[#allocation2 + $0xa0] sm:$0xff] %vm300, %v1657
        %1715 = vst.msk [vmem:[#allocation2 + $0xa8] sm:$0xff] %vm447, %v1659
        %1716 = vst [vmem:[#allocation2 + $0xb0] sm:$0xff] %v1669
        %1717 = vst.msk [vmem:[#allocation2 + $0xb8] sm:$0xff] %vm300, %v1661
        %v1718 = vld [vmem:[#allocation2] sm:$0xff]
        %v1719 = vld [vmem:[#allocation2 + $0x8] sm:$0xff]
        %v1720 = vld [vmem:[#allocation2 + $0x18] sm:$0xff]
        %v1721 = vld [vmem:[#allocation2 + $0x20] sm:$0xff]
        %v1722 = vld [vmem:[#allocation2 + $0x30] sm:$0xff]
        %v1723 = vld [vmem:[#allocation2 + $0x38] sm:$0xff]
        %v1724 = vld [vmem:[#allocation2 + $0x48] sm:$0xff]
        %v1725 = vld [vmem:[#allocation2 + $0x50] sm:$0xff]
        %v1726 = vld [vmem:[#allocation2 + $0x60] sm:$0xff]
        %v1727 = vld [vmem:[#allocation2 + $0x68] sm:$0xff]
        %v1728 = vld [vmem:[#allocation2 + $0x78] sm:$0xff]
        %v1729 = vld [vmem:[#allocation2 + $0x80] sm:$0xff]
        %v1730 = vld [vmem:[#allocation2 + $0x90] sm:$0xff]
        %v1731 = vld [vmem:[#allocation2 + $0x98] sm:$0xff]
        %v1732 = vld [vmem:[#allocation2 + $0xa8] sm:$0xff]
        %v1733 = vld [vmem:[#allocation2 + $0xb0] sm:$0xff]
        %v1734 = vld [vmem:[#allocation2 + $0x10] sm:$0xff]
        %v1735 = vld [vmem:[#allocation2 + $0x28] sm:$0xff]
        %v1736 = vld [vmem:[#allocation2 + $0x40] sm:$0xff]
        %v1737 = vld [vmem:[#allocation2 + $0x58] sm:$0xff]
        %v1738 = vld [vmem:[#allocation2 + $0x70] sm:$0xff]
        %v1739 = vld [vmem:[#allocation2 + $0x88] sm:$0xff]
        %v1740 = vld [vmem:[#allocation2 + $0xa0] sm:$0xff]
        %v1741 = vld [vmem:[#allocation2 + $0xb8] sm:$0xff]
        %1766 = vrot.lane.b32.xlu0 %v1718, 127
        %v1767 = vpop.permute.xlu0 %1766
        %1768 = vrot.lane.b32.xlu0 %v1719, 127
        %v1769 = vpop.permute.xlu0 %1768
        %1770 = vrot.lane.b32.xlu0 %v1734, 127
        %v1771 = vpop.permute.xlu0 %1770
        %1772 = vrot.lane.b32.xlu0 %v1720, 127
        %v1773 = vpop.permute.xlu0 %1772
        %1774 = vrot.lane.b32.xlu0 %v1721, 127
        %v1775 = vpop.permute.xlu0 %1774
        %1776 = vrot.lane.b32.xlu0 %v1735, 127
        %v1777 = vpop.permute.xlu0 %1776
        %1778 = vrot.lane.b32.xlu0 %v1722, 127
        %v1779 = vpop.permute.xlu0 %1778
        %1780 = vrot.lane.b32.xlu0 %v1723, 127
        %v1781 = vpop.permute.xlu0 %1780
        %1782 = vrot.lane.b32.xlu0 %v1736, 127
        %v1783 = vpop.permute.xlu0 %1782
        %1784 = vrot.lane.b32.xlu0 %v1724, 127
        %v1785 = vpop.permute.xlu0 %1784
        %1786 = vrot.lane.b32.xlu0 %v1725, 127
        %v1787 = vpop.permute.xlu0 %1786
        %1788 = vrot.lane.b32.xlu0 %v1737, 127
        %v1789 = vpop.permute.xlu0 %1788
        %1790 = vrot.lane.b32.xlu0 %v1726, 127
        %v1791 = vpop.permute.xlu0 %1790
        %1792 = vrot.lane.b32.xlu0 %v1727, 127
        %v1793 = vpop.permute.xlu0 %1792
        %1794 = vrot.lane.b32.xlu0 %v1738, 127
        %v1795 = vpop.permute.xlu0 %1794
        %1796 = vrot.lane.b32.xlu0 %v1728, 127
        %v1797 = vpop.permute.xlu0 %1796
        %1798 = vrot.lane.b32.xlu0 %v1729, 127
        %v1799 = vpop.permute.xlu0 %1798
        %1800 = vrot.lane.b32.xlu0 %v1739, 127
        %v1801 = vpop.permute.xlu0 %1800
        %1802 = vrot.lane.b32.xlu0 %v1730, 127
        %v1803 = vpop.permute.xlu0 %1802
        %1804 = vrot.lane.b32.xlu0 %v1731, 127
        %v1805 = vpop.permute.xlu0 %1804
        %1806 = vrot.lane.b32.xlu0 %v1740, 127
        %v1807 = vpop.permute.xlu0 %1806
        %1808 = vrot.lane.b32.xlu0 %v1732, 127
        %v1809 = vpop.permute.xlu0 %1808
        %1810 = vrot.lane.b32.xlu0 %v1733, 127
        %v1811 = vpop.permute.xlu0 %1810
        %1812 = vrot.lane.b32.xlu0 %v1741, 127
        %v1813 = vpop.permute.xlu0 %1812
        %v1814 = vsel %vm616, %v1767, %v1769
        %v1815 = vsel %vm616, %v1769, %v1771
        %v1816 = vsel %vm616, %v1773, %v1775
        %v1817 = vsel %vm616, %v1775, %v1777
        %v1818 = vsel %vm616, %v1779, %v1781
        %v1819 = vsel %vm616, %v1781, %v1783
        %v1820 = vsel %vm616, %v1785, %v1787
        %v1821 = vsel %vm616, %v1787, %v1789
        %v1822 = vsel %vm616, %v1791, %v1793
        %v1823 = vsel %vm616, %v1793, %v1795
        %v1824 = vsel %vm616, %v1797, %v1799
        %v1825 = vsel %vm616, %v1799, %v1801
        %v1826 = vsel %vm616, %v1803, %v1805
        %v1827 = vsel %vm616, %v1805, %v1807
        %v1828 = vsel %vm616, %v1809, %v1811
        %v1829 = vsel %vm616, %v1811, %v1813
        %1846 = vmatprep.subr.bf16.mxu0 %v1815
        %1847 = vmatpush1.bf16.msra.mxu0 %v1814
        %1848 = vmatprep.subr.bf16.mxu0 %v1817
        %1849 = vmatpush1.bf16.msra.mxu0 %v1816
        %1850 = vmatprep.subr.bf16.mxu0 %v1819
        %1851 = vmatpush1.bf16.msra.mxu0 %v1818
        %1852 = vmatprep.subr.bf16.mxu0 %v1821
        %1853 = vmatpush1.bf16.msra.mxu0 %v1820
        %1854 = vmatprep.subr.bf16.mxu0 %v1823
        %1855 = vmatpush1.bf16.msra.mxu0 %v1822
        %1856 = vmatprep.subr.bf16.mxu0 %v1825
        %1857 = vmatpush1.bf16.msra.mxu0 %v1824
        %1858 = vmatprep.subr.bf16.mxu0 %v1827
        %1859 = vmatpush1.bf16.msra.mxu0 %v1826
        %1860 = vmatprep.subr.bf16.mxu0 %v1829
        %1861 = vmatpush1.bf16.msra.mxu0 %v1828
        %1862 = vmatprep.subr.bf16.mxu0 0
        %1863 = vmatpush1.bf16.msra.mxu0 0
        %1864 = vmatprep.subr.bf16.mxu0 0
        %1865 = vmatpush1.bf16.msra.mxu0 0
        %1866 = vmatprep.subr.bf16.mxu0 0
        %1867 = vmatpush1.bf16.msra.mxu0 0
        %1868 = vmatprep.subr.bf16.mxu0 0
        %1869 = vmatpush1.bf16.msra.mxu0 0
        %1870 = vmatprep.subr.bf16.mxu0 0
        %1871 = vmatpush1.bf16.msra.mxu0 0
        %1872 = vmatprep.subr.bf16.mxu0 0
        %1873 = vmatpush1.bf16.msra.mxu0 0
        %1874 = vmatprep.subr.bf16.mxu0 0
        %1875 = vmatpush1.bf16.msra.mxu0 0
        %1876 = vmatprep.subr.bf16.mxu0 0
        %1877 = vmatpush1.bf16.msra.mxu0 0
        %1878 = vmatprep.mubr.bf16.mxu0 0
        %1879 = vmatmul.mubr.bf16.gmra.mrb[0].mxu0 %v528
        %v1880 = vpop.f32.mrb[0].mxu0
        %v1881 = vadd.f32 0.0, %v1880
        %v1882 = vpop.f32.mrb[0].mxu0
        %v1883 = vadd.f32 0.0, %v1882
        %v1884 = vpop.f32.mrb[0].mxu0
        %v1885 = vadd.f32 0.0, %v1884
        %v1886 = vpop.f32.mrb[0].mxu0
        %v1887 = vadd.f32 0.0, %v1886
        %1888 = vmatprep.mubr.bf16.mxu0 0
        %1889 = vmatmul.mubr.bf16.gmra.mrb[0].mxu0 %v529
        %v1890 = vpop.f32.mrb[0].mxu0
        %v1891 = vadd.f32 0.0, %v1890
        %v1892 = vpop.f32.mrb[0].mxu0
        %v1893 = vadd.f32 0.0, %v1892
        %v1894 = vpop.f32.mrb[0].mxu0
        %v1895 = vadd.f32 0.0, %v1894
        %v1896 = vpop.f32.mrb[0].mxu0
        %v1897 = vadd.f32 0.0, %v1896
        %1898 = vmatprep.mubr.bf16.mxu0 0
        %1899 = vmatmul.mubr.bf16.gmra.mrb[0].mxu0 %v530
        %v1900 = vpop.f32.mrb[0].mxu0
        %v1901 = vadd.f32 0.0, %v1900
        %v1902 = vpop.f32.mrb[0].mxu0
        %v1903 = vadd.f32 0.0, %v1902
        %v1904 = vpop.f32.mrb[0].mxu0
        %v1905 = vadd.f32 0.0, %v1904
        %v1906 = vpop.f32.mrb[0].mxu0
        %v1907 = vadd.f32 0.0, %v1906
        %1908 = vmatprep.mubr.bf16.mxu0 0
        %1909 = vmatmul.mubr.bf16.gmra.mrb[0].mxu0 %v531
        %v1910 = vpop.f32.mrb[0].mxu0
        %v1911 = vadd.f32 0.0, %v1910
        %v1912 = vpop.f32.mrb[0].mxu0
        %v1913 = vadd.f32 0.0, %v1912
        %v1914 = vpop.f32.mrb[0].mxu0
        %v1915 = vadd.f32 0.0, %v1914
        %v1916 = vpop.f32.mrb[0].mxu0
        %v1917 = vadd.f32 0.0, %v1916
        %1918 = vmatprep.mubr.bf16.mxu0 0
        %1919 = vmatmul.mubr.bf16.gmra.mrb[0].mxu0 %v532
        %v1920 = vpop.f32.mrb[0].mxu0
        %v1921 = vadd.f32 0.0, %v1920
        %v1922 = vpop.f32.mrb[0].mxu0
        %v1923 = vadd.f32 0.0, %v1922
        %v1924 = vpop.f32.mrb[0].mxu0
        %v1925 = vadd.f32 0.0, %v1924
        %v1926 = vpop.f32.mrb[0].mxu0
        %v1927 = vadd.f32 0.0, %v1926
        %1928 = vmatprep.mubr.bf16.mxu0 0
        %1929 = vmatmul.mubr.bf16.gmra.mrb[0].mxu0 %v533
        %v1930 = vpop.f32.mrb[0].mxu0
        %v1931 = vadd.f32 0.0, %v1930
        %v1932 = vpop.f32.mrb[0].mxu0
        %v1933 = vadd.f32 0.0, %v1932
        %v1934 = vpop.f32.mrb[0].mxu0
        %v1935 = vadd.f32 0.0, %v1934
        %v1936 = vpop.f32.mrb[0].mxu0
        %v1937 = vadd.f32 0.0, %v1936
        %1938 = vmatprep.mubr.bf16.mxu0 0
        %1939 = vmatmul.mubr.bf16.gmra.mrb[0].mxu0 %v534
        %v1940 = vpop.f32.mrb[0].mxu0
        %v1941 = vadd.f32 0.0, %v1940
        %v1942 = vpop.f32.mrb[0].mxu0
        %v1943 = vadd.f32 0.0, %v1942
        %v1944 = vpop.f32.mrb[0].mxu0
        %v1945 = vadd.f32 0.0, %v1944
        %v1946 = vpop.f32.mrb[0].mxu0
        %v1947 = vadd.f32 0.0, %v1946
        %1948 = vmatprep.mubr.bf16.mxu0 0
        %1949 = vmatmul.mubr.bf16.gmra.mrb[0].mxu0 %v535
        %v1950 = vpop.f32.mrb[0].mxu0
        %v1951 = vadd.f32 0.0, %v1950
        %v1952 = vpop.f32.mrb[0].mxu0
        %v1953 = vadd.f32 0.0, %v1952
        %v1954 = vpop.f32.mrb[0].mxu0
        %v1955 = vadd.f32 0.0, %v1954
        %v1956 = vpop.f32.mrb[0].mxu0
        %v1957 = vadd.f32 0.0, %v1956
        %1958 = vdwg.mxu0
        %1959 = vmatprep.subr.bf16.mxu0 %v1719
        %1960 = vmatpush1.bf16.msra.mxu0 %v1718
        %1961 = vmatprep.subr.bf16.mxu0 %v1721
        %1962 = vmatpush1.bf16.msra.mxu0 %v1720
        %1963 = vmatprep.subr.bf16.mxu0 %v1723
        %1964 = vmatpush1.bf16.msra.mxu0 %v1722
        %1965 = vmatprep.subr.bf16.mxu0 %v1725
        %1966 = vmatpush1.bf16.msra.mxu0 %v1724
        %1967 = vmatprep.subr.bf16.mxu0 %v1727
        %1968 = vmatpush1.bf16.msra.mxu0 %v1726
        %1969 = vmatprep.subr.bf16.mxu0 %v1729
        %1970 = vmatpush1.bf16.msra.mxu0 %v1728
        %1971 = vmatprep.subr.bf16.mxu0 %v1731
        %1972 = vmatpush1.bf16.msra.mxu0 %v1730
        %1973 = vmatprep.subr.bf16.mxu0 %v1733
        %1974 = vmatpush1.bf16.msra.mxu0 %v1732
        %1975 = vmatprep.subr.bf16.mxu0 0
        %1976 = vmatpush1.bf16.msra.mxu0 0
        %1977 = vmatprep.subr.bf16.mxu0 0
        %1978 = vmatpush1.bf16.msra.mxu0 0
        %1979 = vmatprep.subr.bf16.mxu0 0
        %1980 = vmatpush1.bf16.msra.mxu0 0
        %1981 = vmatprep.subr.bf16.mxu0 0
        %1982 = vmatpush1.bf16.msra.mxu0 0
        %1983 = vmatprep.subr.bf16.mxu0 0
        %1984 = vmatpush1.bf16.msra.mxu0 0
        %1985 = vmatprep.subr.bf16.mxu0 0
        %1986 = vmatpush1.bf16.msra.mxu0 0
        %1987 = vmatprep.subr.bf16.mxu0 0
        %1988 = vmatpush1.bf16.msra.mxu0 0
        %1989 = vmatprep.subr.bf16.mxu0 0
        %1990 = vmatpush1.bf16.msra.mxu0 0
        %1991 = vmatprep.mubr.bf16.mxu0 0
        %1992 = vmatmul.mubr.bf16.gmra.mrb[0].mxu0 %v794
        %v1993 = vpop.f32.mrb[0].mxu0
        %v1994 = vadd.f32 %v1881, %v1993
        %v1995 = vpop.f32.mrb[0].mxu0
        %v1996 = vadd.f32 %v1883, %v1995
        %v1997 = vpop.f32.mrb[0].mxu0
        %v1998 = vadd.f32 %v1885, %v1997
        %v1999 = vpop.f32.mrb[0].mxu0
        %v2000 = vadd.f32 %v1887, %v1999
        %2001 = vmatprep.mubr.bf16.mxu0 0
        %2002 = vmatmul.mubr.bf16.gmra.mrb[0].mxu0 %v795
        %v2003 = vpop.f32.mrb[0].mxu0
        %v2004 = vadd.f32 %v1891, %v2003
        %v2005 = vpop.f32.mrb[0].mxu0
        %v2006 = vadd.f32 %v1893, %v2005
        %v2007 = vpop.f32.mrb[0].mxu0
        %v2008 = vadd.f32 %v1895, %v2007
        %v2009 = vpop.f32.mrb[0].mxu0
        %v2010 = vadd.f32 %v1897, %v2009
        %2011 = vmatprep.mubr.bf16.mxu0 0
        %2012 = vmatmul.mubr.bf16.gmra.mrb[0].mxu0 %v796
        %v2013 = vpop.f32.mrb[0].mxu0
        %v2014 = vadd.f32 %v1901, %v2013
        %v2015 = vpop.f32.mrb[0].mxu0
        %v2016 = vadd.f32 %v1903, %v2015
        %v2017 = vpop.f32.mrb[0].mxu0
        %v2018 = vadd.f32 %v1905, %v2017
        %v2019 = vpop.f32.mrb[0].mxu0
        %v2020 = vadd.f32 %v1907, %v2019
        %2021 = vmatprep.mubr.bf16.mxu0 0
        %2022 = vmatmul.mubr.bf16.gmra.mrb[0].mxu0 %v797
        %v2023 = vpop.f32.mrb[0].mxu0
        %v2024 = vadd.f32 %v1911, %v2023
        %v2025 = vpop.f32.mrb[0].mxu0
        %v2026 = vadd.f32 %v1913, %v2025
        %v2027 = vpop.f32.mrb[0].mxu0
        %v2028 = vadd.f32 %v1915, %v2027
        %v2029 = vpop.f32.mrb[0].mxu0
        %v2030 = vadd.f32 %v1917, %v2029
        %2031 = vmatprep.mubr.bf16.mxu0 0
        %2032 = vmatmul.mubr.bf16.gmra.mrb[0].mxu0 %v798
        %v2033 = vpop.f32.mrb[0].mxu0
        %v2034 = vadd.f32 %v1921, %v2033
        %v2035 = vpop.f32.mrb[0].mxu0
        %v2036 = vadd.f32 %v1923, %v2035
        %v2037 = vpop.f32.mrb[0].mxu0
        %v2038 = vadd.f32 %v1925, %v2037
        %v2039 = vpop.f32.mrb[0].mxu0
        %v2040 = vadd.f32 %v1927, %v2039
        %2041 = vmatprep.mubr.bf16.mxu0 0
        %2042 = vmatmul.mubr.bf16.gmra.mrb[0].mxu0 %v799
        %v2043 = vpop.f32.mrb[0].mxu0
        %v2044 = vadd.f32 %v1931, %v2043
        %v2045 = vpop.f32.mrb[0].mxu0
        %v2046 = vadd.f32 %v1933, %v2045
        %v2047 = vpop.f32.mrb[0].mxu0
        %v2048 = vadd.f32 %v1935, %v2047
        %v2049 = vpop.f32.mrb[0].mxu0
        %v2050 = vadd.f32 %v1937, %v2049
        %2051 = vmatprep.mubr.bf16.mxu0 0
        %2052 = vmatmul.mubr.bf16.gmra.mrb[0].mxu0 %v800
        %v2053 = vpop.f32.mrb[0].mxu0
        %v2054 = vadd.f32 %v1941, %v2053
        %v2055 = vpop.f32.mrb[0].mxu0
        %v2056 = vadd.f32 %v1943, %v2055
        %v2057 = vpop.f32.mrb[0].mxu0
        %v2058 = vadd.f32 %v1945, %v2057
        %v2059 = vpop.f32.mrb[0].mxu0
        %v2060 = vadd.f32 %v1947, %v2059
        %2061 = vmatprep.mubr.bf16.mxu0 0
        %2062 = vmatmul.mubr.bf16.gmra.mrb[0].mxu0 %v801
        %v2063 = vpop.f32.mrb[0].mxu0
        %v2064 = vadd.f32 %v1951, %v2063
        %v2065 = vpop.f32.mrb[0].mxu0
        %v2066 = vadd.f32 %v1953, %v2065
        %v2067 = vpop.f32.mrb[0].mxu0
        %v2068 = vadd.f32 %v1955, %v2067
        %v2069 = vpop.f32.mrb[0].mxu0
        %v2070 = vadd.f32 %v1957, %v2069
        %2071 = vdwg.mxu0
        %2072 = vrot.lane.b32.xlu0 %v1718, 126
        %v2073 = vpop.permute.xlu0 %2072
        %2074 = vrot.lane.b32.xlu0 %v1719, 126
        %v2075 = vpop.permute.xlu0 %2074
        %2076 = vrot.lane.b32.xlu0 %v1734, 126
        %v2077 = vpop.permute.xlu0 %2076
        %2078 = vrot.lane.b32.xlu0 %v1720, 126
        %v2079 = vpop.permute.xlu0 %2078
        %2080 = vrot.lane.b32.xlu0 %v1721, 126
        %v2081 = vpop.permute.xlu0 %2080
        %2082 = vrot.lane.b32.xlu0 %v1735, 126
        %v2083 = vpop.permute.xlu0 %2082
        %2084 = vrot.lane.b32.xlu0 %v1722, 126
        %v2085 = vpop.permute.xlu0 %2084
        %2086 = vrot.lane.b32.xlu0 %v1723, 126
        %v2087 = vpop.permute.xlu0 %2086
        %2088 = vrot.lane.b32.xlu0 %v1736, 126
        %v2089 = vpop.permute.xlu0 %2088
        %2090 = vrot.lane.b32.xlu0 %v1724, 126
        %v2091 = vpop.permute.xlu0 %2090
        %2092 = vrot.lane.b32.xlu0 %v1725, 126
        %v2093 = vpop.permute.xlu0 %2092
        %2094 = vrot.lane.b32.xlu0 %v1737, 126
        %v2095 = vpop.permute.xlu0 %2094
        %2096 = vrot.lane.b32.xlu0 %v1726, 126
        %v2097 = vpop.permute.xlu0 %2096
        %2098 = vrot.lane.b32.xlu0 %v1727, 126
        %v2099 = vpop.permute.xlu0 %2098
        %2100 = vrot.lane.b32.xlu0 %v1738, 126
        %v2101 = vpop.permute.xlu0 %2100
        %2102 = vrot.lane.b32.xlu0 %v1728, 126
        %v2103 = vpop.permute.xlu0 %2102
        %2104 = vrot.lane.b32.xlu0 %v1729, 126
        %v2105 = vpop.permute.xlu0 %2104
        %2106 = vrot.lane.b32.xlu0 %v1739, 126
        %v2107 = vpop.permute.xlu0 %2106
        %2108 = vrot.lane.b32.xlu0 %v1730, 126
        %v2109 = vpop.permute.xlu0 %2108
        %2110 = vrot.lane.b32.xlu0 %v1731, 126
        %v2111 = vpop.permute.xlu0 %2110
        %2112 = vrot.lane.b32.xlu0 %v1740, 126
        %v2113 = vpop.permute.xlu0 %2112
        %2114 = vrot.lane.b32.xlu0 %v1732, 126
        %v2115 = vpop.permute.xlu0 %2114
        %2116 = vrot.lane.b32.xlu0 %v1733, 126
        %v2117 = vpop.permute.xlu0 %2116
        %2118 = vrot.lane.b32.xlu0 %v1741, 126
        %v2119 = vpop.permute.xlu0 %2118
        %v2120 = vsel %vm1019, %v2073, %v2075
        %v2121 = vsel %vm1019, %v2075, %v2077
        %v2122 = vsel %vm1019, %v2079, %v2081
        %v2123 = vsel %vm1019, %v2081, %v2083
        %v2124 = vsel %vm1019, %v2085, %v2087
        %v2125 = vsel %vm1019, %v2087, %v2089
        %v2126 = vsel %vm1019, %v2091, %v2093
        %v2127 = vsel %vm1019, %v2093, %v2095
        %v2128 = vsel %vm1019, %v2097, %v2099
        %v2129 = vsel %vm1019, %v2099, %v2101
        %v2130 = vsel %vm1019, %v2103, %v2105
        %v2131 = vsel %vm1019, %v2105, %v2107
        %v2132 = vsel %vm1019, %v2109, %v2111
        %v2133 = vsel %vm1019, %v2111, %v2113
        %v2134 = vsel %vm1019, %v2115, %v2117
        %v2135 = vsel %vm1019, %v2117, %v2119
        %2152 = vmatprep.subr.bf16.mxu0 %v2121
        %2153 = vmatpush1.bf16.msra.mxu0 %v2120
        %2154 = vmatprep.subr.bf16.mxu0 %v2123
        %2155 = vmatpush1.bf16.msra.mxu0 %v2122
        %2156 = vmatprep.subr.bf16.mxu0 %v2125
        %2157 = vmatpush1.bf16.msra.mxu0 %v2124
        %2158 = vmatprep.subr.bf16.mxu0 %v2127
        %2159 = vmatpush1.bf16.msra.mxu0 %v2126
        %2160 = vmatprep.subr.bf16.mxu0 %v2129
        %2161 = vmatpush1.bf16.msra.mxu0 %v2128
        %2162 = vmatprep.subr.bf16.mxu0 %v2131
        %2163 = vmatpush1.bf16.msra.mxu0 %v2130
        %2164 = vmatprep.subr.bf16.mxu0 %v2133
        %2165 = vmatpush1.bf16.msra.mxu0 %v2132
        %2166 = vmatprep.subr.bf16.mxu0 %v2135
        %2167 = vmatpush1.bf16.msra.mxu0 %v2134
        %2168 = vmatprep.subr.bf16.mxu0 0
        %2169 = vmatpush1.bf16.msra.mxu0 0
        %2170 = vmatprep.subr.bf16.mxu0 0
        %2171 = vmatpush1.bf16.msra.mxu0 0
        %2172 = vmatprep.subr.bf16.mxu0 0
        %2173 = vmatpush1.bf16.msra.mxu0 0
        %2174 = vmatprep.subr.bf16.mxu0 0
        %2175 = vmatpush1.bf16.msra.mxu0 0
        %2176 = vmatprep.subr.bf16.mxu0 0
        %2177 = vmatpush1.bf16.msra.mxu0 0
        %2178 = vmatprep.subr.bf16.mxu0 0
        %2179 = vmatpush1.bf16.msra.mxu0 0
        %2180 = vmatprep.subr.bf16.mxu0 0
        %2181 = vmatpush1.bf16.msra.mxu0 0
        %2182 = vmatprep.subr.bf16.mxu0 0
        %2183 = vmatpush1.bf16.msra.mxu0 0
        %2184 = vmatprep.mubr.bf16.mxu0 0
        %2185 = vmatmul.mubr.bf16.gmra.mrb[0].mxu0 %v955
        %v2186 = vpop.f32.mrb[0].mxu0
        %v2187 = vadd.f32 0.0, %v2186
        %v2188 = vpop.f32.mrb[0].mxu0
        %v2189 = vadd.f32 0.0, %v2188
        %v2190 = vpop.f32.mrb[0].mxu0
        %v2191 = vadd.f32 0.0, %v2190
        %v2192 = vpop.f32.mrb[0].mxu0
        %v2193 = vadd.f32 0.0, %v2192
        %2194 = vmatprep.mubr.bf16.mxu0 0
        %2195 = vmatmul.mubr.bf16.gmra.mrb[0].mxu0 %v956
        %v2196 = vpop.f32.mrb[0].mxu0
        %v2197 = vadd.f32 0.0, %v2196
        %v2198 = vpop.f32.mrb[0].mxu0
        %v2199 = vadd.f32 0.0, %v2198
        %v2200 = vpop.f32.mrb[0].mxu0
        %v2201 = vadd.f32 0.0, %v2200
        %v2202 = vpop.f32.mrb[0].mxu0
        %v2203 = vadd.f32 0.0, %v2202
        %2204 = vmatprep.mubr.bf16.mxu0 0
        %2205 = vmatmul.mubr.bf16.gmra.mrb[0].mxu0 %v957
        %v2206 = vpop.f32.mrb[0].mxu0
        %v2207 = vadd.f32 0.0, %v2206
        %v2208 = vpop.f32.mrb[0].mxu0
        %v2209 = vadd.f32 0.0, %v2208
        %v2210 = vpop.f32.mrb[0].mxu0
        %v2211 = vadd.f32 0.0, %v2210
        %v2212 = vpop.f32.mrb[0].mxu0
        %v2213 = vadd.f32 0.0, %v2212
        %2214 = vmatprep.mubr.bf16.mxu0 0
        %2215 = vmatmul.mubr.bf16.gmra.mrb[0].mxu0 %v958
        %v2216 = vpop.f32.mrb[0].mxu0
        %v2217 = vadd.f32 0.0, %v2216
        %v2218 = vpop.f32.mrb[0].mxu0
        %v2219 = vadd.f32 0.0, %v2218
        %v2220 = vpop.f32.mrb[0].mxu0
        %v2221 = vadd.f32 0.0, %v2220
        %v2222 = vpop.f32.mrb[0].mxu0
        %v2223 = vadd.f32 0.0, %v2222
        %2224 = vmatprep.mubr.bf16.mxu0 0
        %2225 = vmatmul.mubr.bf16.gmra.mrb[0].mxu0 %v959
        %v2226 = vpop.f32.mrb[0].mxu0
        %v2227 = vadd.f32 0.0, %v2226
        %v2228 = vpop.f32.mrb[0].mxu0
        %v2229 = vadd.f32 0.0, %v2228
        %v2230 = vpop.f32.mrb[0].mxu0
        %v2231 = vadd.f32 0.0, %v2230
        %v2232 = vpop.f32.mrb[0].mxu0
        %v2233 = vadd.f32 0.0, %v2232
        %2234 = vmatprep.mubr.bf16.mxu0 0
        %2235 = vmatmul.mubr.bf16.gmra.mrb[0].mxu0 %v960
        %v2236 = vpop.f32.mrb[0].mxu0
        %v2237 = vadd.f32 0.0, %v2236
        %v2238 = vpop.f32.mrb[0].mxu0
        %v2239 = vadd.f32 0.0, %v2238
        %v2240 = vpop.f32.mrb[0].mxu0
        %v2241 = vadd.f32 0.0, %v2240
        %v2242 = vpop.f32.mrb[0].mxu0
        %v2243 = vadd.f32 0.0, %v2242
        %2244 = vmatprep.mubr.bf16.mxu0 0
        %2245 = vmatmul.mubr.bf16.gmra.mrb[0].mxu0 %v961
        %v2246 = vpop.f32.mrb[0].mxu0
        %v2247 = vadd.f32 0.0, %v2246
        %v2248 = vpop.f32.mrb[0].mxu0
        %v2249 = vadd.f32 0.0, %v2248
        %v2250 = vpop.f32.mrb[0].mxu0
        %v2251 = vadd.f32 0.0, %v2250
        %v2252 = vpop.f32.mrb[0].mxu0
        %v2253 = vadd.f32 0.0, %v2252
        %2254 = vmatprep.mubr.bf16.mxu0 0
        %2255 = vmatmul.mubr.bf16.gmra.mrb[0].mxu0 %v962
        %v2256 = vpop.f32.mrb[0].mxu0
        %v2257 = vadd.f32 0.0, %v2256
        %v2258 = vpop.f32.mrb[0].mxu0
        %v2259 = vadd.f32 0.0, %v2258
        %v2260 = vpop.f32.mrb[0].mxu0
        %v2261 = vadd.f32 0.0, %v2260
        %v2262 = vpop.f32.mrb[0].mxu0
        %v2263 = vadd.f32 0.0, %v2262
        %2264 = vdwg.mxu0
        %v2265 = vadd.f32 %v1994, %v2187
        %v2266 = vadd.f32 %v1996, %v2189
        %v2267 = vadd.f32 %v1998, %v2191
        %v2268 = vadd.f32 %v2000, %v2193
        %v2269 = vadd.f32 %v2004, %v2197
        %v2270 = vadd.f32 %v2006, %v2199
        %v2271 = vadd.f32 %v2008, %v2201
        %v2272 = vadd.f32 %v2010, %v2203
        %v2273 = vadd.f32 %v2014, %v2207
        %v2274 = vadd.f32 %v2016, %v2209
        %v2275 = vadd.f32 %v2018, %v2211
        %v2276 = vadd.f32 %v2020, %v2213
        %v2277 = vadd.f32 %v2024, %v2217
        %v2278 = vadd.f32 %v2026, %v2219
        %v2279 = vadd.f32 %v2028, %v2221
        %v2280 = vadd.f32 %v2030, %v2223
        %v2281 = vadd.f32 %v2034, %v2227
        %v2282 = vadd.f32 %v2036, %v2229
        %v2283 = vadd.f32 %v2038, %v2231
        %v2284 = vadd.f32 %v2040, %v2233
        %v2285 = vadd.f32 %v2044, %v2237
        %v2286 = vadd.f32 %v2046, %v2239
        %v2287 = vadd.f32 %v2048, %v2241
        %v2288 = vadd.f32 %v2050, %v2243
        %v2289 = vadd.f32 %v2054, %v2247
        %v2290 = vadd.f32 %v2056, %v2249
        %v2291 = vadd.f32 %v2058, %v2251
        %v2292 = vadd.f32 %v2060, %v2253
        %v2293 = vadd.f32 %v2064, %v2257
        %v2294 = vadd.f32 %v2066, %v2259
        %v2295 = vadd.f32 %v2068, %v2261
        %v2296 = vadd.f32 %v2070, %v2263
        %v2297 = vmul.f32 %v2265, %v1200
        %v2298 = vmul.f32 %v2266, %v1200
        %v2299 = vmul.f32 %v2267, %v1205
        %v2300 = vmul.f32 %v2268, %v1205
        %v2301 = vmul.f32 %v2269, %v1210
        %v2302 = vmul.f32 %v2270, %v1210
        %v2303 = vmul.f32 %v2271, %v1215
        %v2304 = vmul.f32 %v2272, %v1215
        %v2305 = vmul.f32 %v2273, %v1220
        %v2306 = vmul.f32 %v2274, %v1220
        %v2307 = vmul.f32 %v2275, %v1225
        %v2308 = vmul.f32 %v2276, %v1225
        %v2309 = vmul.f32 %v2277, %v1230
        %v2310 = vmul.f32 %v2278, %v1230
        %v2311 = vmul.f32 %v2279, %v1235
        %v2312 = vmul.f32 %v2280, %v1235
        %v2313 = vmul.f32 %v2281, %v1240
        %v2314 = vmul.f32 %v2282, %v1240
        %v2315 = vmul.f32 %v2283, %v1245
        %v2316 = vmul.f32 %v2284, %v1245
        %v2317 = vmul.f32 %v2285, %v1250
        %v2318 = vmul.f32 %v2286, %v1250
        %v2319 = vmul.f32 %v2287, %v1255
        %v2320 = vmul.f32 %v2288, %v1255
        %v2321 = vmul.f32 %v2289, %v1260
        %v2322 = vmul.f32 %v2290, %v1260
        %v2323 = vmul.f32 %v2291, %v1265
        %v2324 = vmul.f32 %v2292, %v1265
        %v2325 = vmul.f32 %v2293, %v1270
        %v2326 = vmul.f32 %v2294, %v1270
        %v2327 = vmul.f32 %v2295, %v1275
        %v2328 = vmul.f32 %v2296, %v1275
        %v2329 = vadd.f32 %v2297, %v1312
        %v2330 = vadd.f32 %v2298, %v1312
        %v2331 = vadd.f32 %v2299, %v1317
        %v2332 = vadd.f32 %v2300, %v1317
        %v2333 = vadd.f32 %v2301, %v1322
        %v2334 = vadd.f32 %v2302, %v1322
        %v2335 = vadd.f32 %v2303, %v1327
        %v2336 = vadd.f32 %v2304, %v1327
        %v2337 = vadd.f32 %v2305, %v1332
        %v2338 = vadd.f32 %v2306, %v1332
        %v2339 = vadd.f32 %v2307, %v1337
        %v2340 = vadd.f32 %v2308, %v1337
        %v2341 = vadd.f32 %v2309, %v1342
        %v2342 = vadd.f32 %v2310, %v1342
        %v2343 = vadd.f32 %v2311, %v1347
        %v2344 = vadd.f32 %v2312, %v1347
        %v2345 = vadd.f32 %v2313, %v1352
        %v2346 = vadd.f32 %v2314, %v1352
        %v2347 = vadd.f32 %v2315, %v1357
        %v2348 = vadd.f32 %v2316, %v1357
        %v2349 = vadd.f32 %v2317, %v1362
        %v2350 = vadd.f32 %v2318, %v1362
        %v2351 = vadd.f32 %v2319, %v1367
        %v2352 = vadd.f32 %v2320, %v1367
        %v2353 = vadd.f32 %v2321, %v1372
        %v2354 = vadd.f32 %v2322, %v1372
        %v2355 = vadd.f32 %v2323, %v1377
        %v2356 = vadd.f32 %v2324, %v1377
        %v2357 = vadd.f32 %v2325, %v1382
        %v2358 = vadd.f32 %v2326, %v1382
        %v2359 = vadd.f32 %v2327, %v1387
        %v2360 = vadd.f32 %v2328, %v1387
        %v2361 = vmax.f32 %v2329, 0.0
        %v2362 = vmax.f32 %v2330, 0.0
        %v2363 = vmax.f32 %v2331, 0.0
        %v2364 = vmax.f32 %v2332, 0.0
        %v2365 = vmax.f32 %v2333, 0.0
        %v2366 = vmax.f32 %v2334, 0.0
        %v2367 = vmax.f32 %v2335, 0.0
        %v2368 = vmax.f32 %v2336, 0.0
        %v2369 = vmax.f32 %v2337, 0.0
        %v2370 = vmax.f32 %v2338, 0.0
        %v2371 = vmax.f32 %v2339, 0.0
        %v2372 = vmax.f32 %v2340, 0.0
        %v2373 = vmax.f32 %v2341, 0.0
        %v2374 = vmax.f32 %v2342, 0.0
        %v2375 = vmax.f32 %v2343, 0.0
        %v2376 = vmax.f32 %v2344, 0.0
        %v2377 = vmax.f32 %v2345, 0.0
        %v2378 = vmax.f32 %v2346, 0.0
        %v2379 = vmax.f32 %v2347, 0.0
        %v2380 = vmax.f32 %v2348, 0.0
        %v2381 = vmax.f32 %v2349, 0.0
        %v2382 = vmax.f32 %v2350, 0.0
        %v2383 = vmax.f32 %v2351, 0.0
        %v2384 = vmax.f32 %v2352, 0.0
        %v2385 = vmax.f32 %v2353, 0.0
        %v2386 = vmax.f32 %v2354, 0.0
        %v2387 = vmax.f32 %v2355, 0.0
        %v2388 = vmax.f32 %v2356, 0.0
        %v2389 = vmax.f32 %v2357, 0.0
        %v2390 = vmax.f32 %v2358, 0.0
        %v2391 = vmax.f32 %v2359, 0.0
        %v2392 = vmax.f32 %v2360, 0.0
        %v2393 = vpack.c.bf16 %v2363, %v2361
        %v2394 = vpack.c.bf16 %v2364, %v2362
        %v2395 = vpack.c.bf16 %v2367, %v2365
        %v2396 = vpack.c.bf16 %v2368, %v2366
        %v2397 = vpack.c.bf16 %v2371, %v2369
        %v2398 = vpack.c.bf16 %v2372, %v2370
        %v2399 = vpack.c.bf16 %v2375, %v2373
        %v2400 = vpack.c.bf16 %v2376, %v2374
        %v2401 = vpack.c.bf16 %v2379, %v2377
        %v2402 = vpack.c.bf16 %v2380, %v2378
        %v2403 = vpack.c.bf16 %v2383, %v2381
        %v2404 = vpack.c.bf16 %v2384, %v2382
        %v2405 = vpack.c.bf16 %v2387, %v2385
        %v2406 = vpack.c.bf16 %v2388, %v2386
        %v2407 = vpack.c.bf16 %v2391, %v2389
        %v2408 = vpack.c.bf16 %v2392, %v2390
        %v2425 = vunpack.c.l.b16 %v2393
        %v2426 = vunpack.c.l.b16 %v2394
        %v2427 = vunpack.c.h.b16 %v2393
        %v2428 = vunpack.c.h.b16 %v2394
        %v2429 = vunpack.c.l.b16 %v2395
        %v2430 = vunpack.c.l.b16 %v2396
        %v2431 = vunpack.c.h.b16 %v2395
        %v2432 = vunpack.c.h.b16 %v2396
        %v2433 = vunpack.c.l.b16 %v2397
        %v2434 = vunpack.c.l.b16 %v2398
        %v2435 = vunpack.c.h.b16 %v2397
        %v2436 = vunpack.c.h.b16 %v2398
        %v2437 = vunpack.c.l.b16 %v2399
        %v2438 = vunpack.c.l.b16 %v2400
        %v2439 = vunpack.c.h.b16 %v2399
        %v2440 = vunpack.c.h.b16 %v2400
        %v2441 = vunpack.c.l.b16 %v2401
        %v2442 = vunpack.c.l.b16 %v2402
        %v2443 = vunpack.c.h.b16 %v2401
        %v2444 = vunpack.c.h.b16 %v2402
        %v2445 = vunpack.c.l.b16 %v2403
        %v2446 = vunpack.c.l.b16 %v2404
        %v2447 = vunpack.c.h.b16 %v2403
        %v2448 = vunpack.c.h.b16 %v2404
        %v2449 = vunpack.c.l.b16 %v2405
        %v2450 = vunpack.c.l.b16 %v2406
        %v2451 = vunpack.c.h.b16 %v2405
        %v2452 = vunpack.c.h.b16 %v2406
        %v2453 = vunpack.c.l.b16 %v2407
        %v2454 = vunpack.c.l.b16 %v2408
        %v2455 = vunpack.c.h.b16 %v2407
        %v2456 = vunpack.c.h.b16 %v2408
        %v2457 = vpack.c.b16 %v2426, %v2425
        %v2458 = vpack.c.b16 %v2428, %v2427
        %v2459 = vpack.c.b16 %v2430, %v2429
        %v2460 = vpack.c.b16 %v2432, %v2431
        %v2461 = vpack.c.b16 %v2434, %v2433
        %v2462 = vpack.c.b16 %v2436, %v2435
        %v2463 = vpack.c.b16 %v2438, %v2437
        %v2464 = vpack.c.b16 %v2440, %v2439
        %v2465 = vpack.c.b16 %v2442, %v2441
        %v2466 = vpack.c.b16 %v2444, %v2443
        %v2467 = vpack.c.b16 %v2446, %v2445
        %v2468 = vpack.c.b16 %v2448, %v2447
        %v2469 = vpack.c.b16 %v2450, %v2449
        %v2470 = vpack.c.b16 %v2452, %v2451
        %v2471 = vpack.c.b16 %v2454, %v2453
        %v2472 = vpack.c.b16 %v2456, %v2455
        %s2489 = scalar_lea.vmem %s216, 128 [#allocation6]
        %2490 = vst [vmem:[%s2489] sm:$0xff] %v2457
        %2491 = vst [vmem:[%s2489 + $0x8] sm:$0xff] %v2458
        %2492 = vst [vmem:[%s2489 + $0x10] sm:$0xff] %v2459
        %2493 = vst [vmem:[%s2489 + $0x18] sm:$0xff] %v2460
        %2494 = vst [vmem:[%s2489 + $0x20] sm:$0xff] %v2461
        %2495 = vst [vmem:[%s2489 + $0x28] sm:$0xff] %v2462
        %2496 = vst [vmem:[%s2489 + $0x30] sm:$0xff] %v2463
        %2497 = vst [vmem:[%s2489 + $0x38] sm:$0xff] %v2464
        %2498 = vst [vmem:[%s2489 + $0x40] sm:$0xff] %v2465
        %2499 = vst [vmem:[%s2489 + $0x48] sm:$0xff] %v2466
        %2500 = vst [vmem:[%s2489 + $0x50] sm:$0xff] %v2467
        %2501 = vst [vmem:[%s2489 + $0x58] sm:$0xff] %v2468
        %2502 = vst [vmem:[%s2489 + $0x60] sm:$0xff] %v2469
        %2503 = vst [vmem:[%s2489 + $0x68] sm:$0xff] %v2470
        %2504 = vst [vmem:[%s2489 + $0x70] sm:$0xff] %v2471
        %2505 = vst [vmem:[%s2489 + $0x78] sm:$0xff] %v2472
        %s2506 = sand.u32 %s118, 1
        %s2507 = scalar_lea.sflag [#allocation5], %s2506
        %s2508 = sand.u32 %s118, 1
        %s2509 = smul.addr %s2508, 256
        %s2510 = scalar_lea.vmem [#allocation6], %s2509
        // Predicated region
        $region41: #{conv_layer_forward.1} parent=35 // pred_check
          %p2511 = pneg %p128
        $region42: #{conv_layer_forward.1} parent=35 // pred_check_branch
          %2513 = sbr.rel (%p2511) target = $region44
        $region43: #{conv_layer_forward.1} parent=35 // pred_region
          %s2514 = smul.u32 2, %s21
          %s2516 = ssub.s32 4096, 4096
          %2517 = vsyncadd %s2507, %s2516
          %s2518 = smul.addr %s2514, 32
          %s2519 = smul.addr %s2518, 64
          %s2520 = scalar_lea.hbm %s4, %s2519
          %s2521 = sshll.u32 %s2510, 4
          %s2522 = int_to_ptr.vmem [resolvable:$true] %s2521
          %2527 = dma.vmem_to_hbm [thread:$0]  %s2522, 4096, %s2520, %s2507, 128, 128, 8
        $region44: #{conv_layer_forward.1} parent=35 // pred_fallthru
          _
      $region36: #{conv_layer_forward.1} parent=5 // pred_fallthru
        _
      %p2528 = scmp.le.s32.totalorder 2, %s16
      // Predicated region
      $region45: #{conv_layer_forward.1} parent=5 // pred_check
        %p2529 = pneg %p2528
      $region46: #{conv_layer_forward.1} parent=5 // pred_check_branch
        %2531 = sbr.rel (%p2529) target = $region48
      $region47: #{conv_layer_forward.1} parent=5 // pred_region
        %s2532 = ssub.s32 %s16, 2
        // Predicated region
        $region49: #{conv_layer_forward.1} parent=47 // pred_check
          %p2533 = pneg %p134
        $region50: #{conv_layer_forward.1} parent=47 // pred_check_branch
          %2535 = sbr.rel (%p2533) target = $region52
        $region51: #{conv_layer_forward.1} parent=47 // pred_region
          %s2536 = sand.u32 %s119, 1
          %s2537 = scalar_lea.sflag [#allocation5], %s2536
          %s2538 = sand.u32 %s119, 1
          %s2539 = smul.addr %s2538, 256
          %s2540 = scalar_lea.vmem [#allocation6], %s2539
          %2541 = dma.done %s2537, 4096
        $region52: #{conv_layer_forward.1} parent=47 // pred_fallthru
          _
      $region48: #{conv_layer_forward.1} parent=5 // pred_fallthru
        _
    $region6: #{conv_layer_forward.1} parent=1 // loop_footer
      %s20 = sadd.s32 1, %s16
    $region7: #{conv_layer_forward.1} parent=1 // loop_footer_branch
      %15 = sbr.rel target = $region3
    $region8: #{conv_layer_forward.1} parent=1 // loop_exit
      _
    %2542 = vsyncpa [#allocation4], 1
    %s2543 = scalar_lea.sflag [#allocation4], 1
    %2544 = vsyncpa %s2543, 1
    %2545 = vsyncpa [#allocation5], 1
    %s2546 = scalar_lea.sflag [#allocation5], 1
    %2547 = vsyncpa %s2546, 1

</llo_original>
